<compile_context>
chip_gen: v5e
topology: v5e:2x2
jax: 0.10.0
libtpu: 0.0.40
codegen_flags: <defaults>
</compile_context>

<pallas_src>
import jax
import jax.numpy as jnp
from jax.experimental import pallas as pl
from jax.experimental.pallas import tpu as pltpu

EPS = 1e-6


def _softplus(x):
    # Matches torch.nn.Softplus(beta=1, threshold=20).
    return jnp.where(x > 20.0, x, jnp.log1p(jnp.exp(x)))


def _round_up(x, m):
    return ((x + m - 1) // m) * m


def _mxu_width():
    """256-lane packing on v6e/v7x (2x256x256 MXU), 128 on v5e and older."""
    try:
        kind = jax.devices()[0].device_kind.lower()
    except Exception:
        return 256
    if any(t in kind for t in ("v2", "v3", "v4", "v5")):
        return 128
    return 256


def features_cost_kernel(u_ref, v_ref, wut_ref, bu_ref, wvt_ref, bv_ref,
                         a_ref, s_ref, o_ref):
    # u_ref/v_ref: (tn_p, lane) packed row tiles; wut/wvt/a: (lane, lane)
    # block-diagonal; biases: (1, lane); s_ref: (lane, pack) segment-sum
    # matrix; o_ref: (tn_p, pack).
    u = jnp.dot(u_ref[...], wut_ref[...], preferred_element_type=jnp.float32)
    u = _softplus(u + bu_ref[...])
    v = jnp.dot(v_ref[...], wvt_ref[...], preferred_element_type=jnp.float32)
    v = _softplus(v + bv_ref[...])
    ua = jnp.dot(u, a_ref[...], preferred_element_type=jnp.float32)
    # Per-original-row sum over each k-lane segment, done on the MXU.
    seg = jnp.dot(ua * v, s_ref[...], preferred_element_type=jnp.float32)
    o_ref[...] = jnp.maximum(seg, 0.0) + EPS


def features_cost_model(U, V, wu, bu, wv, bv, A, *, tn=16384, mxu_width=None):
    """U, V: (N, k) float32.  Returns (N,) float32."""
    N, k = U.shape
    assert V.shape == (N, k)

    width = _mxu_width() if mxu_width is None else mxu_width
    if width % k == 0:
        pack = width // k            # rows packed per lane group
    elif 128 % k == 0:
        pack = 128 // k
    else:
        # TODO(synk): support k that does not divide the MXU width by
        # zero-padding the feature dim (A's zero rows/cols kill the padding).
        raise NotImplementedError("feature dim must divide 128 or the MXU width")
    lane = pack * k                  # packed lane width (128 or 256)
    align_p = 8                      # packed-row granule: 8 sublanes

    f32 = jnp.float32
    U = U.astype(f32)
    V = V.astype(f32)

    # Only pad (copy) when N is not a multiple of `pack`; never to the tile.
    n_pack = _round_up(N, pack)
    if n_pack != N:
        U = jnp.pad(U, ((0, n_pack - N), (0, 0)))
        V = jnp.pad(V, ((0, n_pack - N), (0, 0)))
    n_rows = n_pack // pack

    # Free, contiguous re-view: `pack` consecutive rows per packed lane row.
    Up = U.reshape(n_rows, lane)
    Vp = V.reshape(n_rows, lane)

    # Choose the packed-row tile: ~2 MiB input blocks by default, never bigger
    # than the problem, and capped so the grid keeps >= 4 steps when possible
    # (megacore split on v7x + amortised per-step overhead).
    tn_p = max(align_p, (max(tn, align_p * pack) // pack // align_p) * align_p)
    tn_p = min(tn_p, _round_up(n_rows, align_p))
    if n_rows >= 4 * align_p:
        tn_p = min(tn_p, _round_up(pl.cdiv(n_rows, 4), align_p))
    grid = (pl.cdiv(n_rows, tn_p),)

    # Block-diagonal weights: each k-lane segment sees the original (k, k)
    # transform.  PyTorch Linear is x @ W.T + b, so pre-transpose here.
    eye = jnp.eye(pack, dtype=f32)
    wut_b = jnp.kron(eye, wu.T.astype(f32))                    # (lane, lane)
    wvt_b = jnp.kron(eye, wv.T.astype(f32))                    # (lane, lane)
    a_b = jnp.kron(eye, A.astype(f32))                         # (lane, lane)
    bu_b = jnp.tile(bu.astype(f32).reshape(1, k), (1, pack))   # (1, lane)
    bv_b = jnp.tile(bv.astype(f32).reshape(1, k), (1, pack))   # (1, lane)
    # Segment-sum matrix: column m sums lanes [m*k, (m+1)*k).
    seg_sum = jnp.kron(eye, jnp.ones((k, 1), f32))             # (lane, pack)

    # True double-buffered VMEM footprint: 2 input blocks, the output block
    # (lane-padded to 128 in VMEM), and the resident operands (also
    # double-buffered by the pipeline), +2 MiB headroom.  Cap at 48 MiB so we
    # stay inside v7x's 64 MiB physical VMEM.
    tile_in = tn_p * lane * 4
    tile_out = tn_p * max(pack, 128) * 4
    resident = (3 * lane * lane + 2 * 8 * lane + lane * 128) * 4
    vmem_bytes = 2 * (2 * tile_in + tile_out + resident) + (2 << 20)
    vmem_bytes = int(max(8 << 20, min(vmem_bytes, 48 << 20)))

    out = pl.pallas_call(
        features_cost_kernel,
        out_shape=jax.ShapeDtypeStruct((n_rows, pack), f32),
        grid_spec=pltpu.PrefetchScalarGridSpec(
            num_scalar_prefetch=0,
            grid=grid,
            in_specs=[
                pl.BlockSpec((tn_p, lane), lambda i: (i, 0)),   # packed U tile
                pl.BlockSpec((tn_p, lane), lambda i: (i, 0)),   # packed V tile
                pl.BlockSpec((lane, lane), lambda i: (0, 0)),   # blkdiag Wu^T
                pl.BlockSpec((1, lane), lambda i: (0, 0)),      # tiled bu
                pl.BlockSpec((lane, lane), lambda i: (0, 0)),   # blkdiag Wv^T
                pl.BlockSpec((1, lane), lambda i: (0, 0)),      # tiled bv
                pl.BlockSpec((lane, lane), lambda i: (0, 0)),   # blkdiag A
                pl.BlockSpec((lane, pack), lambda i: (0, 0)),   # segment-sum
            ],
            out_specs=pl.BlockSpec((tn_p, pack), lambda i: (i, 0)),
        ),
        compiler_params=pltpu.CompilerParams(
            dimension_semantics=("parallel",),
            vmem_limit_bytes=vmem_bytes,
        ),
    )(Up, Vp, wut_b, bu_b, wvt_b, bv_b, a_b, seg_sum)

    return out.reshape(-1)[:N]


def reference(U, V, wu, bu, wv, bv, A):
    hp = jax.lax.Precision.HIGHEST
    u = _softplus(jnp.dot(U, wu.T, precision=hp) + bu)
    v = _softplus(jnp.dot(V, wv.T, precision=hp) + bv)
    c = jnp.dot(u, A, precision=hp) * v
    c = jnp.maximum(c.sum(-1), 0.0)
    return c.reshape(-1) + EPS


if __name__ == "__main__":
    key = jax.random.PRNGKey(0)
    N, k = 4096, 32
    k_u, k_v, k_wu, k_bu, k_wv, k_bv, k_a = jax.random.split(key, 7)

    U = jax.random.normal(k_u, (N, k), dtype=jnp.float32)
    V = jax.random.normal(k_v, (N, k), dtype=jnp.float32)

    # Deterministic parameter init (PyTorch-style ranges):
    bound = float(1.0 / (k ** 0.5))
    wu = jax.random.uniform(k_wu, (k, k), jnp.float32, -bound, bound)
    bu = jax.random.uniform(k_bu, (k,), jnp.float32, -bound, bound)
    wv = jax.random.uniform(k_wv, (k, k), jnp.float32, -bound, bound)
    bv = jax.random.uniform(k_bv, (k,), jnp.float32, -bound, bound)
    A = jax.random.uniform(k_a, (k, k), jnp.float32, 0.0, 1.0)   # torch.rand

    out = jax.block_until_ready(features_cost_model(U, V, wu, bu, wv, bv, A))
    ref = reference(U, V, wu, bu, wv, bv, A)
    assert out.shape == (N,)
    assert jnp.allclose(out, ref, rtol=1e-5, atol=1e-5), (
        "max abs err", float(jnp.max(jnp.abs(out - ref))))

    # Ragged N: exercises both the pad-to-pack path and the masked ragged
    # last grid block (no pad-to-tile copies anymore).
    N2 = 1003
    out2 = jax.block_until_ready(
        features_cost_model(U[:N2], V[:N2], wu, bu, wv, bv, A))
    ref2 = reference(U[:N2], V[:N2], wu, bu, wv, bv, A)
    assert out2.shape == (N2,)
    assert jnp.allclose(out2, ref2, rtol=1e-5, atol=1e-5), (
        "max abs err (ragged)", float(jnp.max(jnp.abs(out2 - ref2))))

    print("KERNEL_OK")
</pallas_src>

<mosaic_0001>
module attributes {stable_mosaic.version = 11 : i64} {
  func.func @features_cost_kernel(%arg0: i32, %arg1: memref<128x256xf32, #tpu.memory_space<vmem>>, %arg2: memref<128x256xf32, #tpu.memory_space<vmem>>, %arg3: memref<256x256xf32, #tpu.memory_space<vmem>>, %arg4: memref<1x256xf32, #tpu.memory_space<vmem>>, %arg5: memref<256x256xf32, #tpu.memory_space<vmem>>, %arg6: memref<1x256xf32, #tpu.memory_space<vmem>>, %arg7: memref<256x256xf32, #tpu.memory_space<vmem>>, %arg8: memref<256x8xf32, #tpu.memory_space<vmem>>, %arg9: memref<128x8xf32, #tpu.memory_space<vmem>>) attributes {dimension_semantics = [#tpu.dimension_semantics<parallel>], iteration_bounds = array<i64: 4>, scalar_prefetch = 0 : i64, scratch_operands = 0 : i64, tpu.core_type = #tpu.core_type<tc>, window_params = [{transform_indices = @transform_0, window_bounds = array<i64: 128, 256>}, {transform_indices = @transform_1, window_bounds = array<i64: 128, 256>}, {pipeline_mode = #tpu.pipeline_mode<synchronous>, transform_indices = @transform_2, window_bounds = array<i64: 256, 256>}, {pipeline_mode = #tpu.pipeline_mode<synchronous>, transform_indices = @transform_3, window_bounds = array<i64: 1, 256>}, {pipeline_mode = #tpu.pipeline_mode<synchronous>, transform_indices = @transform_4, window_bounds = array<i64: 256, 256>}, {pipeline_mode = #tpu.pipeline_mode<synchronous>, transform_indices = @transform_5, window_bounds = array<i64: 1, 256>}, {pipeline_mode = #tpu.pipeline_mode<synchronous>, transform_indices = @transform_6, window_bounds = array<i64: 256, 256>}, {pipeline_mode = #tpu.pipeline_mode<synchronous>, transform_indices = @transform_7, window_bounds = array<i64: 256, 8>}, {transform_indices = @transform_8, window_bounds = array<i64: 128, 8>}]} {
    %c0 = arith.constant 0 : index
    %c0_0 = arith.constant 0 : index
    %0 = vector.load %arg1[%c0, %c0_0] : memref<128x256xf32, #tpu.memory_space<vmem>>, vector<128x256xf32>
    %c0_1 = arith.constant 0 : index
    %c0_2 = arith.constant 0 : index
    %1 = vector.load %arg3[%c0_1, %c0_2] : memref<256x256xf32, #tpu.memory_space<vmem>>, vector<256x256xf32>
    %cst = arith.constant dense<0.000000e+00> : vector<128x256xf32>
    %2 = tpu.matmul %0, %1, %cst {dimension_numbers = #tpu.dot_dimension_numbers<[1], [0], [0], [1], [0, 0, 1, 1], [], []>} : vector<128x256xf32>, vector<256x256xf32>, vector<128x256xf32> -> vector<128x256xf32>
    %c0_3 = arith.constant 0 : index
    %c0_4 = arith.constant 0 : index
    %3 = vector.load %arg4[%c0_3, %c0_4] : memref<1x256xf32, #tpu.memory_space<vmem>>, vector<1x256xf32>
    %4 = vector.broadcast %3 : vector<1x256xf32> to vector<128x256xf32>
    %5 = arith.addf %2, %4 : vector<128x256xf32>
    %cst_5 = arith.constant 2.000000e+01 : f32
    %6 = vector.broadcast %cst_5 : f32 to vector<128x256xf32>
    %7 = arith.cmpf ogt, %5, %6 : vector<128x256xf32>
    %8 = math.exp %5 : vector<128x256xf32>
    %9 = math.log1p %8 : vector<128x256xf32>
    %10 = arith.select %7, %5, %9 : vector<128x256xi1>, vector<128x256xf32>
    %c0_6 = arith.constant 0 : index
    %c0_7 = arith.constant 0 : index
    %11 = vector.load %arg2[%c0_6, %c0_7] : memref<128x256xf32, #tpu.memory_space<vmem>>, vector<128x256xf32>
    %c0_8 = arith.constant 0 : index
    %c0_9 = arith.constant 0 : index
    %12 = vector.load %arg5[%c0_8, %c0_9] : memref<256x256xf32, #tpu.memory_space<vmem>>, vector<256x256xf32>
    %cst_10 = arith.constant dense<0.000000e+00> : vector<128x256xf32>
    %13 = tpu.matmul %11, %12, %cst_10 {dimension_numbers = #tpu.dot_dimension_numbers<[1], [0], [0], [1], [0, 0, 1, 1], [], []>} : vector<128x256xf32>, vector<256x256xf32>, vector<128x256xf32> -> vector<128x256xf32>
    %c0_11 = arith.constant 0 : index
    %c0_12 = arith.constant 0 : index
    %14 = vector.load %arg6[%c0_11, %c0_12] : memref<1x256xf32, #tpu.memory_space<vmem>>, vector<1x256xf32>
    %15 = vector.broadcast %14 : vector<1x256xf32> to vector<128x256xf32>
    %16 = arith.addf %13, %15 : vector<128x256xf32>
    %cst_13 = arith.constant 2.000000e+01 : f32
    %17 = vector.broadcast %cst_13 : f32 to vector<128x256xf32>
    %18 = arith.cmpf ogt, %16, %17 : vector<128x256xf32>
    %19 = math.exp %16 : vector<128x256xf32>
    %20 = math.log1p %19 : vector<128x256xf32>
    %21 = arith.select %18, %16, %20 : vector<128x256xi1>, vector<128x256xf32>
    %c0_14 = arith.constant 0 : index
    %c0_15 = arith.constant 0 : index
    %22 = vector.load %arg7[%c0_14, %c0_15] : memref<256x256xf32, #tpu.memory_space<vmem>>, vector<256x256xf32>
    %cst_16 = arith.constant dense<0.000000e+00> : vector<128x256xf32>
    %23 = tpu.matmul %10, %22, %cst_16 {dimension_numbers = #tpu.dot_dimension_numbers<[1], [0], [0], [1], [0, 0, 1, 1], [], []>} : vector<128x256xf32>, vector<256x256xf32>, vector<128x256xf32> -> vector<128x256xf32>
    %24 = arith.mulf %23, %21 : vector<128x256xf32>
    %c0_17 = arith.constant 0 : index
    %c0_18 = arith.constant 0 : index
    %25 = vector.load %arg8[%c0_17, %c0_18] : memref<256x8xf32, #tpu.memory_space<vmem>>, vector<256x8xf32>
    %cst_19 = arith.constant dense<0.000000e+00> : vector<128x8xf32>
    %26 = tpu.matmul %24, %25, %cst_19 {dimension_numbers = #tpu.dot_dimension_numbers<[1], [0], [0], [1], [0, 0, 1, 1], [], []>} : vector<128x256xf32>, vector<256x8xf32>, vector<128x8xf32> -> vector<128x8xf32>
    %cst_20 = arith.constant 0.000000e+00 : f32
    %27 = vector.broadcast %cst_20 : f32 to vector<128x8xf32>
    %28 = arith.maximumf %26, %27 : vector<128x8xf32>
    %cst_21 = arith.constant 9.99999997E-7 : f32
    %29 = vector.broadcast %cst_21 : f32 to vector<128x8xf32>
    %30 = arith.addf %28, %29 : vector<128x8xf32>
    %c0_22 = arith.constant 0 : index
    %c0_23 = arith.constant 0 : index
    %31 = vector.load %arg9[%c0_22, %c0_23] : memref<128x8xf32, #tpu.memory_space<vmem>>, vector<128x8xf32>
    tpu.vector_store %arg9[%c0_22, %c0_23], %30 {strides = array<i32>} : memref<128x8xf32, #tpu.memory_space<vmem>>, vector<128x8xf32>,
    return
  }
  func.func @transform_0(%arg0: i32) -> (i32, i32) {
    %c0_i32 = arith.constant 0 : i32
    %c0_i32_0 = arith.constant 0 : i32
    return %arg0, %c0_i32 : i32, i32
  }
  func.func @transform_1(%arg0: i32) -> (i32, i32) {
    %c0_i32 = arith.constant 0 : i32
    %c0_i32_0 = arith.constant 0 : i32
    return %arg0, %c0_i32 : i32, i32
  }
  func.func @transform_2(%arg0: i32) -> (i32, i32) {
    %c0_i32 = arith.constant 0 : i32
    %c0_i32_0 = arith.constant 0 : i32
    %c0_i32_1 = arith.constant 0 : i32
    return %c0_i32, %c0_i32_0 : i32, i32
  }
  func.func @transform_3(%arg0: i32) -> (i32, i32) {
    %c0_i32 = arith.constant 0 : i32
    %c0_i32_0 = arith.constant 0 : i32
    %c0_i32_1 = arith.constant 0 : i32
    return %c0_i32, %c0_i32_0 : i32, i32
  }
  func.func @transform_4(%arg0: i32) -> (i32, i32) {
    %c0_i32 = arith.constant 0 : i32
    %c0_i32_0 = arith.constant 0 : i32
    %c0_i32_1 = arith.constant 0 : i32
    return %c0_i32, %c0_i32_0 : i32, i32
  }
  func.func @transform_5(%arg0: i32) -> (i32, i32) {
    %c0_i32 = arith.constant 0 : i32
    %c0_i32_0 = arith.constant 0 : i32
    %c0_i32_1 = arith.constant 0 : i32
    return %c0_i32, %c0_i32_0 : i32, i32
  }
  func.func @transform_6(%arg0: i32) -> (i32, i32) {
    %c0_i32 = arith.constant 0 : i32
    %c0_i32_0 = arith.constant 0 : i32
    %c0_i32_1 = arith.constant 0 : i32
    return %c0_i32, %c0_i32_0 : i32, i32
  }
  func.func @transform_7(%arg0: i32) -> (i32, i32) {
    %c0_i32 = arith.constant 0 : i32
    %c0_i32_0 = arith.constant 0 : i32
    %c0_i32_1 = arith.constant 0 : i32
    return %c0_i32, %c0_i32_0 : i32, i32
  }
  func.func @transform_8(%arg0: i32) -> (i32, i32) {
    %c0_i32 = arith.constant 0 : i32
    %c0_i32_0 = arith.constant 0 : i32
    return %arg0, %c0_i32 : i32, i32
  }
}

</mosaic_0001>

<llo_original>
// kernel: tpu_custom_call.1
$region0: #{tpu_custom_call.1}
  #allocation0 [shape = 'u32[]', space=smem, size = 0x4, offset = 0x4, fixed_abs, tag = 'smem constant byte address 0x4 - core index']
  #allocation1 [shape = 'u32[72,128]{1,0:T(1,128)}', space=vmem, size = 0x9000, scoped, tag = 'internal scratch']
  %s0 = inlined_call_operand.hbm [shape: f32[512,256], index: 0, kind: input, shape index: {}]
  %s1 = inlined_call_operand.hbm [shape: f32[512,256], index: 1, kind: input, shape index: {}]
  %s2 = inlined_call_operand.hbm [shape: f32[256,256], index: 2, kind: input, shape index: {}]
  %s3 = inlined_call_operand.vmem [shape: f32[1,256], index: 3, kind: input, shape index: {}]
  %s4 = inlined_call_operand.hbm [shape: f32[256,256], index: 4, kind: input, shape index: {}]
  %s5 = inlined_call_operand.vmem [shape: f32[1,256], index: 5, kind: input, shape index: {}]
  %s6 = inlined_call_operand.hbm [shape: f32[256,256], index: 6, kind: input, shape index: {}]
  %s7 = inlined_call_operand.vmem [shape: f32[256,8], index: 7, kind: input, shape index: {}]
  %s8 = inlined_call_operand.vmem [shape: f32[512,8], index: 8, kind: output, shape index: {}]
  %s9 = sld [smem:[#allocation0]]
  $region85: #{tpu_custom_call.1} parent=0
    _
  %s11 = ssub.s32 1, %s9
  %s12 = scalar_select 0, %s11, %s9
  $region1: #{tpu_custom_call.1} parent=0
    #allocation2 [shape = 'u8[262144]{0}', space=vmem, size = 0x40000, scoped, tag = 'input window, operand 0']
    #allocation3 [shape = 's32[2]{0}', space=sflag, size = 0x8, scoped, tag = 'scoped memory for tpu_custom_call.1']
    #allocation4 [shape = 'u8[262144]{0}', space=vmem, size = 0x40000, scoped, tag = 'input window, operand 1']
    #allocation5 [shape = 's32[2]{0}', space=sflag, size = 0x8, scoped, tag = 'scoped memory for tpu_custom_call.1']
    #allocation6 [shape = 'u8[262144]{0}', space=vmem, size = 0x40000, scoped, tag = 'input window, operand 2, single buffered']
    #allocation7 [shape = 'u8[262144]{0}', space=vmem, size = 0x40000, scoped, tag = 'input window, operand 4, single buffered']
    #allocation8 [shape = 's32[1]{0}', space=sflag, size = 0x4, scoped, tag = 'scoped memory for tpu_custom_call.1']
    #allocation9 [shape = 'u8[262144]{0}', space=vmem, size = 0x40000, scoped, tag = 'input window, operand 6, single buffered']
    %13 = vsyncpa [#allocation3], 0
    %s14 = scalar_lea.sflag [#allocation3], 1
    %15 = vsyncpa %s14, 0
    %16 = vsyncpa [#allocation5], 0
    %s17 = scalar_lea.sflag [#allocation5], 1
    %18 = vsyncpa %s17, 0
    %19 = vsyncpa [#allocation8], 0
    loop: start=0, step=1, limit=6
    $region2: #{tpu_custom_call.1} parent=1 // loop_pre_header
      _
    $region3: #{tpu_custom_call.1} parent=1 // loop_header
      %s21 = sphi 0, %s25
      %p22 = scmp.ge.s32.totalorder %s21, 6
      %s31 = sphi 0, %s33
      %s34 = sphi 0, %s31
      %s35 = sphi 0, %s34
      %s51 = sphi 0, %s35
      %s57 = sphi 0, %s59
      %s60 = sphi 0, %s57
      %s61 = sphi 0, %s60
      %s77 = sphi 0, %s61
      %s81 = sphi 0, %s81
      %s83 = sphi 0, %s81
      %s84 = sphi 0, %s83
      %s98 = sphi 0, %s84
      %s102 = sphi 0, %s102
      %s104 = sphi 0, %s102
      %s105 = sphi 0, %s104
      %s119 = sphi 0, %s105
      %s123 = sphi 0, %s123
      %s125 = sphi 0, %s123
      %s126 = sphi 0, %s125
      %s140 = sphi 0, %s126
      %s144 = sphi 0, %s144
      %s146 = sphi 0, %s144
      %s147 = sphi 0, %s146
      %s161 = sphi 0, %s147
      %s165 = sphi 0, %s165
      %s167 = sphi 0, %s165
      %s168 = sphi 0, %s167
      %s182 = sphi 0, %s168
      %s186 = sphi 0, %s186
      %s188 = sphi 0, %s186
      %s189 = sphi 0, %s188
      %s203 = sphi 0, %s189
      %s209 = sphi 0, %s211
      %s212 = sphi 0, %s209
      %s213 = sphi 0, %s212
      %s229 = sphi 0, %s213
    $region4: #{tpu_custom_call.1} parent=1 // loop_header_branch
      %24 = sbr.rel (%p22) target = $region8
    $region5: #{tpu_custom_call.1} parent=1 // loop_body
      %s26 = ssub.s32 %s21, 1
      %s27 = ssub.s32 %s21, 2
      %s28 = sadd.s32 %s21, 1
      %s29 = ssub.s32 %s21, %s28
      %p30 = scmp.eq.s32.totalorder %s29, 0
      %s32 = sadd.s32 %s31, 1
      %s33 = scalar_select %p30, %s31, %s32
      %p36 = pneg %p30
      %p37 = scmp.eq.s32.totalorder %s21, 3
      %p38 = por %p36, %p37
      %p39 = scmp.ne.s32.totalorder %s31, %s34
      %p40 = scmp.eq.s32.totalorder %s21, 0
      %p41 = por %p39, %p40
      %p42 = scmp.ne.s32.totalorder %s31, %s34
      %p43 = scmp.eq.s32.totalorder %s26, 3
      %p44 = por %p42, %p43
      %p45 = scmp.ne.s32.totalorder %s34, %s35
      %p46 = scmp.eq.s32.totalorder %s26, 0
      %p47 = por %p45, %p46
      %p48 = scmp.ne.s32.totalorder %s34, %s35
      %p49 = scmp.eq.s32.totalorder %s27, 3
      %p50 = por %p48, %p49
      %p52 = scmp.ne.s32.totalorder %s35, %s51
      %p53 = scmp.eq.s32.totalorder %s27, 0
      %p54 = por %p52, %p53
      %s55 = ssub.s32 %s21, %s28
      %p56 = scmp.eq.s32.totalorder %s55, 0
      %s58 = sadd.s32 %s57, 1
      %s59 = scalar_select %p56, %s57, %s58
      %p62 = pneg %p56
      %p63 = scmp.eq.s32.totalorder %s21, 3
      %p64 = por %p62, %p63
      %p65 = scmp.ne.s32.totalorder %s57, %s60
      %p66 = scmp.eq.s32.totalorder %s21, 0
      %p67 = por %p65, %p66
      %p68 = scmp.ne.s32.totalorder %s57, %s60
      %p69 = scmp.eq.s32.totalorder %s26, 3
      %p70 = por %p68, %p69
      %p71 = scmp.ne.s32.totalorder %s60, %s61
      %p72 = scmp.eq.s32.totalorder %s26, 0
      %p73 = por %p71, %p72
      %p74 = scmp.ne.s32.totalorder %s60, %s61
      %p75 = scmp.eq.s32.totalorder %s27, 3
      %p76 = por %p74, %p75
      %p78 = scmp.ne.s32.totalorder %s61, %s77
      %p79 = scmp.eq.s32.totalorder %s27, 0
      %p80 = por %p78, %p79
      %s82 = sadd.s32 %s81, 1
      %p85 = scmp.eq.s32.totalorder %s21, 3
      %p86 = scmp.ne.s32.totalorder %s81, %s83
      %p87 = scmp.eq.s32.totalorder %s21, 0
      %p88 = por %p86, %p87
      %p89 = scmp.ne.s32.totalorder %s81, %s83
      %p90 = scmp.eq.s32.totalorder %s26, 3
      %p91 = por %p89, %p90
      %p92 = scmp.ne.s32.totalorder %s83, %s84
      %p93 = scmp.eq.s32.totalorder %s26, 0
      %p94 = por %p92, %p93
      %p95 = scmp.ne.s32.totalorder %s83, %s84
      %p96 = scmp.eq.s32.totalorder %s27, 3
      %p97 = por %p95, %p96
      %p99 = scmp.ne.s32.totalorder %s84, %s98
      %p100 = scmp.eq.s32.totalorder %s27, 0
      %p101 = por %p99, %p100
      %s103 = sadd.s32 %s102, 1
      %p106 = scmp.eq.s32.totalorder %s21, 3
      %p107 = scmp.ne.s32.totalorder %s102, %s104
      %p108 = scmp.eq.s32.totalorder %s21, 0
      %p109 = por %p107, %p108
      %p110 = scmp.ne.s32.totalorder %s102, %s104
      %p111 = scmp.eq.s32.totalorder %s26, 3
      %p112 = por %p110, %p111
      %p113 = scmp.ne.s32.totalorder %s104, %s105
      %p114 = scmp.eq.s32.totalorder %s26, 0
      %p115 = por %p113, %p114
      %p116 = scmp.ne.s32.totalorder %s104, %s105
      %p117 = scmp.eq.s32.totalorder %s27, 3
      %p118 = por %p116, %p117
      %p120 = scmp.ne.s32.totalorder %s105, %s119
      %p121 = scmp.eq.s32.totalorder %s27, 0
      %p122 = por %p120, %p121
      %s124 = sadd.s32 %s123, 1
      %p127 = scmp.eq.s32.totalorder %s21, 3
      %p128 = scmp.ne.s32.totalorder %s123, %s125
      %p129 = scmp.eq.s32.totalorder %s21, 0
      %p130 = por %p128, %p129
      %p131 = scmp.ne.s32.totalorder %s123, %s125
      %p132 = scmp.eq.s32.totalorder %s26, 3
      %p133 = por %p131, %p132
      %p134 = scmp.ne.s32.totalorder %s125, %s126
      %p135 = scmp.eq.s32.totalorder %s26, 0
      %p136 = por %p134, %p135
      %p137 = scmp.ne.s32.totalorder %s125, %s126
      %p138 = scmp.eq.s32.totalorder %s27, 3
      %p139 = por %p137, %p138
      %p141 = scmp.ne.s32.totalorder %s126, %s140
      %p142 = scmp.eq.s32.totalorder %s27, 0
      %p143 = por %p141, %p142
      %s145 = sadd.s32 %s144, 1
      %p148 = scmp.eq.s32.totalorder %s21, 3
      %p149 = scmp.ne.s32.totalorder %s144, %s146
      %p150 = scmp.eq.s32.totalorder %s21, 0
      %p151 = por %p149, %p150
      %p152 = scmp.ne.s32.totalorder %s144, %s146
      %p153 = scmp.eq.s32.totalorder %s26, 3
      %p154 = por %p152, %p153
      %p155 = scmp.ne.s32.totalorder %s146, %s147
      %p156 = scmp.eq.s32.totalorder %s26, 0
      %p157 = por %p155, %p156
      %p158 = scmp.ne.s32.totalorder %s146, %s147
      %p159 = scmp.eq.s32.totalorder %s27, 3
      %p160 = por %p158, %p159
      %p162 = scmp.ne.s32.totalorder %s147, %s161
      %p163 = scmp.eq.s32.totalorder %s27, 0
      %p164 = por %p162, %p163
      %s166 = sadd.s32 %s165, 1
      %p169 = scmp.eq.s32.totalorder %s21, 3
      %p170 = scmp.ne.s32.totalorder %s165, %s167
      %p171 = scmp.eq.s32.totalorder %s21, 0
      %p172 = por %p170, %p171
      %p173 = scmp.ne.s32.totalorder %s165, %s167
      %p174 = scmp.eq.s32.totalorder %s26, 3
      %p175 = por %p173, %p174
      %p176 = scmp.ne.s32.totalorder %s167, %s168
      %p177 = scmp.eq.s32.totalorder %s26, 0
      %p178 = por %p176, %p177
      %p179 = scmp.ne.s32.totalorder %s167, %s168
      %p180 = scmp.eq.s32.totalorder %s27, 3
      %p181 = por %p179, %p180
      %p183 = scmp.ne.s32.totalorder %s168, %s182
      %p184 = scmp.eq.s32.totalorder %s27, 0
      %p185 = por %p183, %p184
      %s187 = sadd.s32 %s186, 1
      %p190 = scmp.eq.s32.totalorder %s21, 3
      %p191 = scmp.ne.s32.totalorder %s186, %s188
      %p192 = scmp.eq.s32.totalorder %s21, 0
      %p193 = por %p191, %p192
      %p194 = scmp.ne.s32.totalorder %s186, %s188
      %p195 = scmp.eq.s32.totalorder %s26, 3
      %p196 = por %p194, %p195
      %p197 = scmp.ne.s32.totalorder %s188, %s189
      %p198 = scmp.eq.s32.totalorder %s26, 0
      %p199 = por %p197, %p198
      %p200 = scmp.ne.s32.totalorder %s188, %s189
      %p201 = scmp.eq.s32.totalorder %s27, 3
      %p202 = por %p200, %p201
      %p204 = scmp.ne.s32.totalorder %s189, %s203
      %p205 = scmp.eq.s32.totalorder %s27, 0
      %p206 = por %p204, %p205
      %s207 = ssub.s32 %s21, %s28
      %p208 = scmp.eq.s32.totalorder %s207, 0
      %s210 = sadd.s32 %s209, 1
      %s211 = scalar_select %p208, %s209, %s210
      %p214 = pneg %p208
      %p215 = scmp.eq.s32.totalorder %s21, 3
      %p216 = por %p214, %p215
      %p217 = scmp.ne.s32.totalorder %s209, %s212
      %p218 = scmp.eq.s32.totalorder %s21, 0
      %p219 = por %p217, %p218
      %p220 = scmp.ne.s32.totalorder %s209, %s212
      %p221 = scmp.eq.s32.totalorder %s26, 3
      %p222 = por %p220, %p221
      %p223 = scmp.ne.s32.totalorder %s212, %s213
      %p224 = scmp.eq.s32.totalorder %s26, 0
      %p225 = por %p223, %p224
      %p226 = scmp.ne.s32.totalorder %s212, %s213
      %p227 = scmp.eq.s32.totalorder %s27, 3
      %p228 = por %p226, %p227
      %p230 = scmp.ne.s32.totalorder %s213, %s229
      %p231 = scmp.eq.s32.totalorder %s27, 0
      %p232 = por %p230, %p231
      %p233 = scmp.le.s32.totalorder 1, %s21
      %p234 = scmp.lt.s32.totalorder %s21, 5
      %p235 = pnand %p233, %p234
      %p236 = pneg %p235
      // Predicated region
      $region9: #{tpu_custom_call.1} parent=5 // pred_check
        _
      $region10: #{tpu_custom_call.1} parent=5 // pred_check_branch
        %238 = sbr.rel (%p235) target = $region12
      $region11: #{tpu_custom_call.1} parent=5 // pred_region
        %s239 = ssub.s32 %s21, 1
        // Predicated region
        $region13: #{tpu_custom_call.1} parent=11 // pred_check
          %p240 = pneg %p94
        $region14: #{tpu_custom_call.1} parent=11 // pred_check_branch
          %242 = sbr.rel (%p240) target = $region16
        $region15: #{tpu_custom_call.1} parent=11 // pred_region
          %244 = vsyncadd [#allocation5], 0
          %s245 = sshll.u32 %s2, 4
          %s246 = int_to_ptr.hbm [resolvable:$true] %s245
          %s247 = sshll.u32 [#allocation6], 4
          %s248 = int_to_ptr.vmem [resolvable:$true] %s247
          %253 = dma.hbm_to_vmem [thread:$0]  %s246, 8192, %s248, [#allocation5], 256, 256, 16
        $region16: #{tpu_custom_call.1} parent=11 // pred_fallthru
          _
        // Predicated region
        $region17: #{tpu_custom_call.1} parent=11 // pred_check
          %p254 = pneg %p115
        $region18: #{tpu_custom_call.1} parent=11 // pred_check_branch
          %256 = sbr.rel (%p254) target = $region20
        $region19: #{tpu_custom_call.1} parent=11 // pred_region
          _
        $region20: #{tpu_custom_call.1} parent=11 // pred_fallthru
          _
        // Predicated region
        $region21: #{tpu_custom_call.1} parent=11 // pred_check
          %p257 = pneg %p136
        $region22: #{tpu_custom_call.1} parent=11 // pred_check_branch
          %259 = sbr.rel (%p257) target = $region24
        $region23: #{tpu_custom_call.1} parent=11 // pred_region
          %261 = vsyncadd [#allocation8], 0
          %s262 = sshll.u32 %s4, 4
          %s263 = int_to_ptr.hbm [resolvable:$true] %s262
          %s264 = sshll.u32 [#allocation7], 4
          %s265 = int_to_ptr.vmem [resolvable:$true] %s264
          %270 = dma.hbm_to_vmem [thread:$0]  %s263, 8192, %s265, [#allocation8], 256, 256, 16
        $region24: #{tpu_custom_call.1} parent=11 // pred_fallthru
          _
        // Predicated region
        $region25: #{tpu_custom_call.1} parent=11 // pred_check
          %p271 = pneg %p157
        $region26: #{tpu_custom_call.1} parent=11 // pred_check_branch
          %273 = sbr.rel (%p271) target = $region28
        $region27: #{tpu_custom_call.1} parent=11 // pred_region
          _
        $region28: #{tpu_custom_call.1} parent=11 // pred_fallthru
          _
        // Predicated region
        $region29: #{tpu_custom_call.1} parent=11 // pred_check
          %p274 = pneg %p178
        $region30: #{tpu_custom_call.1} parent=11 // pred_check_branch
          %276 = sbr.rel (%p274) target = $region32
        $region31: #{tpu_custom_call.1} parent=11 // pred_region
          %278 = vsyncadd [#allocation8], 0
          %s279 = sshll.u32 %s6, 4
          %s280 = int_to_ptr.hbm [resolvable:$true] %s279
          %s281 = sshll.u32 [#allocation9], 4
          %s282 = int_to_ptr.vmem [resolvable:$true] %s281
          %287 = dma.hbm_to_vmem [thread:$0]  %s280, 8192, %s282, [#allocation8], 256, 256, 16
        $region32: #{tpu_custom_call.1} parent=11 // pred_fallthru
          _
        // Predicated region
        $region33: #{tpu_custom_call.1} parent=11 // pred_check
          %p288 = pneg %p199
        $region34: #{tpu_custom_call.1} parent=11 // pred_check_branch
          %290 = sbr.rel (%p288) target = $region36
        $region35: #{tpu_custom_call.1} parent=11 // pred_region
          _
        $region36: #{tpu_custom_call.1} parent=11 // pred_fallthru
          _
      $region12: #{tpu_custom_call.1} parent=5 // pred_fallthru
        _
      %p291 = scmp.lt.s32.totalorder %s21, 4
      // Predicated region
      $region37: #{tpu_custom_call.1} parent=5 // pred_check
        %p292 = pneg %p291
      $region38: #{tpu_custom_call.1} parent=5 // pred_check_branch
        %294 = sbr.rel (%p292) target = $region40
      $region39: #{tpu_custom_call.1} parent=5 // pred_region
        // Predicated region
        $region41: #{tpu_custom_call.1} parent=39 // pred_check
          %p295 = pneg %p41
        $region42: #{tpu_custom_call.1} parent=39 // pred_check_branch
          %297 = sbr.rel (%p295) target = $region44
        $region43: #{tpu_custom_call.1} parent=39 // pred_region
          %s298 = sand.u32 %s31, 1
          %s299 = scalar_lea.sflag [#allocation3], %s298
          %s300 = sand.u32 %s31, 1
          %s301 = smul.addr %s300, 256
          %s302 = scalar_lea.vmem [#allocation2], %s301
          %s303 = smul.u32 16, %s21
          %305 = vsyncadd %s299, 0
          %s306 = smul.addr %s303, 2
          %s307 = smul.addr %s306, 8
          %s308 = scalar_lea.hbm %s0, %s307
          %s309 = sshll.u32 %s308, 4
          %s310 = int_to_ptr.hbm [resolvable:$true] %s309
          %s311 = sshll.u32 %s302, 4
          %s312 = int_to_ptr.vmem [resolvable:$true] %s311
          %317 = dma.hbm_to_vmem [thread:$0]  %s310, 4096, %s312, %s299, 256, 256, 16
        $region44: #{tpu_custom_call.1} parent=39 // pred_fallthru
          _
        // Predicated region
        $region45: #{tpu_custom_call.1} parent=39 // pred_check
          %p318 = pneg %p67
        $region46: #{tpu_custom_call.1} parent=39 // pred_check_branch
          %320 = sbr.rel (%p318) target = $region48
        $region47: #{tpu_custom_call.1} parent=39 // pred_region
          %s321 = sand.u32 %s21, 1
          %s322 = scalar_lea.sflag [#allocation5], %s321
          %s323 = sand.u32 %s57, 1
          %s324 = smul.addr %s323, 256
          %s325 = scalar_lea.vmem [#allocation4], %s324
          %s326 = smul.u32 16, %s21
          %328 = vsyncadd %s322, 0
          %s329 = smul.addr %s326, 2
          %s330 = smul.addr %s329, 8
          %s331 = scalar_lea.hbm %s1, %s330
          %s332 = sshll.u32 %s331, 4
          %s333 = int_to_ptr.hbm [resolvable:$true] %s332
          %s334 = sshll.u32 %s325, 4
          %s335 = int_to_ptr.vmem [resolvable:$true] %s334
          %340 = dma.hbm_to_vmem [thread:$0]  %s333, 4096, %s335, %s322, 256, 256, 16
        $region48: #{tpu_custom_call.1} parent=39 // pred_fallthru
          _
      $region40: #{tpu_custom_call.1} parent=5 // pred_fallthru
        _
      %p341 = scmp.le.s32.totalorder 1, %s21
      %p342 = scmp.lt.s32.totalorder %s21, 5
      %p343 = pnand %p341, %p342
      %p344 = pneg %p343
      // Predicated region
      $region49: #{tpu_custom_call.1} parent=5 // pred_check
        _
      $region50: #{tpu_custom_call.1} parent=5 // pred_check_branch
        %346 = sbr.rel (%p343) target = $region52
      $region51: #{tpu_custom_call.1} parent=5 // pred_region
        %s347 = ssub.s32 %s21, 1
        %s348 = sand.u32 %s34, 1
        %s349 = scalar_lea.sflag [#allocation3], %s348
        %s350 = sand.u32 %s34, 1
        %s351 = smul.addr %s350, 256
        %s352 = scalar_lea.vmem [#allocation2], %s351
        // Predicated region
        $region53: #{tpu_custom_call.1} parent=51 // pred_check
          %p353 = pneg %p47
        $region54: #{tpu_custom_call.1} parent=51 // pred_check_branch
          %355 = sbr.rel (%p353) target = $region56
        $region55: #{tpu_custom_call.1} parent=51 // pred_region
          %357 = dma.done %s349, 4096
        $region56: #{tpu_custom_call.1} parent=51 // pred_fallthru
          _
        %s358 = sand.u32 %s26, 1
        %s359 = scalar_lea.sflag [#allocation5], %s358
        %s360 = sand.u32 %s60, 1
        %s361 = smul.addr %s360, 256
        %s362 = scalar_lea.vmem [#allocation4], %s361
        // Predicated region
        $region57: #{tpu_custom_call.1} parent=51 // pred_check
          %p363 = pneg %p73
        $region58: #{tpu_custom_call.1} parent=51 // pred_check_branch
          %365 = sbr.rel (%p363) target = $region60
        $region59: #{tpu_custom_call.1} parent=51 // pred_region
          %367 = dma.done %s359, 4096
        $region60: #{tpu_custom_call.1} parent=51 // pred_fallthru
          _
        // Predicated region
        $region61: #{tpu_custom_call.1} parent=51 // pred_check
          %p368 = pneg %p94
        $region62: #{tpu_custom_call.1} parent=51 // pred_check_branch
          %370 = sbr.rel (%p368) target = $region64
        $region63: #{tpu_custom_call.1} parent=51 // pred_region
          %372 = dma.done [#allocation5], 8192
        $region64: #{tpu_custom_call.1} parent=51 // pred_fallthru
          _
        // Predicated region
        $region65: #{tpu_custom_call.1} parent=51 // pred_check
          %p373 = pneg %p136
        $region66: #{tpu_custom_call.1} parent=51 // pred_check_branch
          %375 = sbr.rel (%p373) target = $region68
        $region67: #{tpu_custom_call.1} parent=51 // pred_region
          %377 = dma.done [#allocation8], 8192
        $region68: #{tpu_custom_call.1} parent=51 // pred_fallthru
          _
        // Predicated region
        $region69: #{tpu_custom_call.1} parent=51 // pred_check
          %p378 = pneg %p178
        $region70: #{tpu_custom_call.1} parent=51 // pred_check_branch
          %380 = sbr.rel (%p378) target = $region72
        $region71: #{tpu_custom_call.1} parent=51 // pred_region
          %382 = dma.done [#allocation8], 8192
        $region72: #{tpu_custom_call.1} parent=51 // pred_fallthru
          _
        %s383 = sand.u32 %s34, 1
        %s384 = scalar_lea.sflag [#allocation3], %s383
        %s385 = sand.u32 %s34, 1
        %s386 = smul.addr %s385, 256
        %s387 = scalar_lea.vmem [#allocation2], %s386
        %p388 = pneg %p47
        %p389 = pneg %p44
        %s390 = sand.u32 %s26, 1
        %s391 = scalar_lea.sflag [#allocation5], %s390
        %s392 = sand.u32 %s60, 1
        %s393 = smul.addr %s392, 256
        %s394 = scalar_lea.vmem [#allocation4], %s393
        %p395 = pneg %p73
        %p396 = pneg %p70
        %p397 = pneg %p94
        %p398 = pneg %p91
        %p399 = pneg %p115
        %p400 = pneg %p112
        %p401 = pneg %p136
        %p402 = pneg %p133
        %p403 = pneg %p157
        %p404 = pneg %p154
        %p405 = pneg %p178
        %p406 = pneg %p175
        %p407 = pneg %p199
        %p408 = pneg %p196
        %p409 = pneg %p225
        %p410 = pneg %p222
        %s411 = smul.u32 16, %s26
        %p412 = scmp.lt.s32.totalorder %s411, 63
        %s413 = scalar_select %p412, %s411, 63
        %s414 = smul.addr %s413, 8
        %s415 = scalar_lea.vmem %s8, %s414
        %s416 = smul.u32 16, %s26
        %s417 = smul.u32 16, %s26
        %s418 = smul.u32 16, %s26
        %p419 = scmp.lt.s32.totalorder %s418, 63
        %s420 = scalar_select %p419, %s418, 63
        %s421 = smul.addr %s420, 8
        %s422 = scalar_lea.vmem %s8, %s421
        %s423 = smul.u32 16, %s26
        %v424 = vld [vmem:[%s352] sm:$0xff]
        %v425 = vld [vmem:[%s352 + $0x8] sm:$0xff]
        %v426 = vld [vmem:[%s352 + $0x10] sm:$0xff]
        %v427 = vld [vmem:[%s352 + $0x18] sm:$0xff]
        %v428 = vld [vmem:[%s352 + $0x20] sm:$0xff]
        %v429 = vld [vmem:[%s352 + $0x28] sm:$0xff]
        %v430 = vld [vmem:[%s352 + $0x30] sm:$0xff]
        %v431 = vld [vmem:[%s352 + $0x38] sm:$0xff]
        %v432 = vld [vmem:[%s352 + $0x40] sm:$0xff]
        %v433 = vld [vmem:[%s352 + $0x48] sm:$0xff]
        %v434 = vld [vmem:[%s352 + $0x50] sm:$0xff]
        %v435 = vld [vmem:[%s352 + $0x58] sm:$0xff]
        %v436 = vld [vmem:[%s352 + $0x60] sm:$0xff]
        %v437 = vld [vmem:[%s352 + $0x68] sm:$0xff]
        %v438 = vld [vmem:[%s352 + $0x70] sm:$0xff]
        %v439 = vld [vmem:[%s352 + $0x78] sm:$0xff]
        %v440 = vld [vmem:[%s352 + $0x80] sm:$0xff]
        %v441 = vld [vmem:[%s352 + $0x88] sm:$0xff]
        %v442 = vld [vmem:[%s352 + $0x90] sm:$0xff]
        %v443 = vld [vmem:[%s352 + $0x98] sm:$0xff]
        %v444 = vld [vmem:[%s352 + $0xa0] sm:$0xff]
        %v445 = vld [vmem:[%s352 + $0xa8] sm:$0xff]
        %v446 = vld [vmem:[%s352 + $0xb0] sm:$0xff]
        %v447 = vld [vmem:[%s352 + $0xb8] sm:$0xff]
        %v448 = vld [vmem:[%s352 + $0xc0] sm:$0xff]
        %v449 = vld [vmem:[%s352 + $0xc8] sm:$0xff]
        %v450 = vld [vmem:[%s352 + $0xd0] sm:$0xff]
        %v451 = vld [vmem:[%s352 + $0xd8] sm:$0xff]
        %v452 = vld [vmem:[%s352 + $0xe0] sm:$0xff]
        %v453 = vld [vmem:[%s352 + $0xe8] sm:$0xff]
        %v454 = vld [vmem:[%s352 + $0xf0] sm:$0xff]
        %v455 = vld [vmem:[%s352 + $0xf8] sm:$0xff]
        %v456 = vld [vmem:[#allocation6] sm:$0xff]
        %v457 = vld [vmem:[#allocation6 + $0x8] sm:$0xff]
        %v458 = vld [vmem:[#allocation6 + $0x10] sm:$0xff]
        %v459 = vld [vmem:[#allocation6 + $0x18] sm:$0xff]
        %v460 = vld [vmem:[#allocation6 + $0x20] sm:$0xff]
        %v461 = vld [vmem:[#allocation6 + $0x28] sm:$0xff]
        %v462 = vld [vmem:[#allocation6 + $0x30] sm:$0xff]
        %v463 = vld [vmem:[#allocation6 + $0x38] sm:$0xff]
        %v464 = vld [vmem:[#allocation6 + $0x40] sm:$0xff]
        %v465 = vld [vmem:[#allocation6 + $0x48] sm:$0xff]
        %v466 = vld [vmem:[#allocation6 + $0x50] sm:$0xff]
        %v467 = vld [vmem:[#allocation6 + $0x58] sm:$0xff]
        %v468 = vld [vmem:[#allocation6 + $0x60] sm:$0xff]
        %v469 = vld [vmem:[#allocation6 + $0x68] sm:$0xff]
        %v470 = vld [vmem:[#allocation6 + $0x70] sm:$0xff]
        %v471 = vld [vmem:[#allocation6 + $0x78] sm:$0xff]
        %v472 = vld [vmem:[#allocation6 + $0x80] sm:$0xff]
        %v473 = vld [vmem:[#allocation6 + $0x88] sm:$0xff]
        %v474 = vld [vmem:[#allocation6 + $0x90] sm:$0xff]
        %v475 = vld [vmem:[#allocation6 + $0x98] sm:$0xff]
        %v476 = vld [vmem:[#allocation6 + $0xa0] sm:$0xff]
        %v477 = vld [vmem:[#allocation6 + $0xa8] sm:$0xff]
        %v478 = vld [vmem:[#allocation6 + $0xb0] sm:$0xff]
        %v479 = vld [vmem:[#allocation6 + $0xb8] sm:$0xff]
        %v480 = vld [vmem:[#allocation6 + $0xc0] sm:$0xff]
        %v481 = vld [vmem:[#allocation6 + $0xc8] sm:$0xff]
        %v482 = vld [vmem:[#allocation6 + $0xd0] sm:$0xff]
        %v483 = vld [vmem:[#allocation6 + $0xd8] sm:$0xff]
        %v484 = vld [vmem:[#allocation6 + $0xe0] sm:$0xff]
        %v485 = vld [vmem:[#allocation6 + $0xe8] sm:$0xff]
        %v486 = vld [vmem:[#allocation6 + $0xf0] sm:$0xff]
        %v487 = vld [vmem:[#allocation6 + $0xf8] sm:$0xff]
        %v488 = vld [vmem:[#allocation6 + $0x100] sm:$0xff]
        %v489 = vld [vmem:[#allocation6 + $0x108] sm:$0xff]
        %v490 = vld [vmem:[#allocation6 + $0x110] sm:$0xff]
        %v491 = vld [vmem:[#allocation6 + $0x118] sm:$0xff]
        %v492 = vld [vmem:[#allocation6 + $0x120] sm:$0xff]
        %v493 = vld [vmem:[#allocation6 + $0x128] sm:$0xff]
        %v494 = vld [vmem:[#allocation6 + $0x130] sm:$0xff]
        %v495 = vld [vmem:[#allocation6 + $0x138] sm:$0xff]
        %v496 = vld [vmem:[#allocation6 + $0x140] sm:$0xff]
        %v497 = vld [vmem:[#allocation6 + $0x148] sm:$0xff]
        %v498 = vld [vmem:[#allocation6 + $0x150] sm:$0xff]
        %v499 = vld [vmem:[#allocation6 + $0x158] sm:$0xff]
        %v500 = vld [vmem:[#allocation6 + $0x160] sm:$0xff]
        %v501 = vld [vmem:[#allocation6 + $0x168] sm:$0xff]
        %v502 = vld [vmem:[#allocation6 + $0x170] sm:$0xff]
        %v503 = vld [vmem:[#allocation6 + $0x178] sm:$0xff]
        %v504 = vld [vmem:[#allocation6 + $0x180] sm:$0xff]
        %v505 = vld [vmem:[#allocation6 + $0x188] sm:$0xff]
        %v506 = vld [vmem:[#allocation6 + $0x190] sm:$0xff]
        %v507 = vld [vmem:[#allocation6 + $0x198] sm:$0xff]
        %v508 = vld [vmem:[#allocation6 + $0x1a0] sm:$0xff]
        %v509 = vld [vmem:[#allocation6 + $0x1a8] sm:$0xff]
        %v510 = vld [vmem:[#allocation6 + $0x1b0] sm:$0xff]
        %v511 = vld [vmem:[#allocation6 + $0x1b8] sm:$0xff]
        %v512 = vld [vmem:[#allocation6 + $0x1c0] sm:$0xff]
        %v513 = vld [vmem:[#allocation6 + $0x1c8] sm:$0xff]
        %v514 = vld [vmem:[#allocation6 + $0x1d0] sm:$0xff]
        %v515 = vld [vmem:[#allocation6 + $0x1d8] sm:$0xff]
        %v516 = vld [vmem:[#allocation6 + $0x1e0] sm:$0xff]
        %v517 = vld [vmem:[#allocation6 + $0x1e8] sm:$0xff]
        %v518 = vld [vmem:[#allocation6 + $0x1f0] sm:$0xff]
        %v519 = vld [vmem:[#allocation6 + $0x1f8] sm:$0xff]
        %v520 = vld [vmem:[%s3] sm:$0x3]
        %v522 = vperm.slane %v520, 0
        %v523 = vperm.slane %v520, 1
        %526 = vmatpush.msra.mxu0 %v486
        %527 = vmatpush.msra.mxu0 %v484
        %528 = vmatpush.msra.mxu0 %v482
        %529 = vmatpush.msra.mxu0 %v480
        %530 = vmatpush.msra.mxu0 %v478
        %531 = vmatpush.msra.mxu0 %v476
        %532 = vmatpush.msra.mxu0 %v474
        %533 = vmatpush.msra.mxu0 %v472
        %534 = vmatpush.msra.mxu0 %v470
        %535 = vmatpush.msra.mxu0 %v468
        %536 = vmatpush.msra.mxu0 %v466
        %537 = vmatpush.msra.mxu0 %v464
        %538 = vmatpush.msra.mxu0 %v462
        %539 = vmatpush.msra.mxu0 %v460
        %540 = vmatpush.msra.mxu0 %v458
        %541 = vmatpush.msra.mxu0 %v456
        %542 = vmatmul.f32.gmra.mxu0 %v424
        %v543 = vpop.f32.mrf.mxu0
        %v544 = vadd.f32 %v522, %v543
        %545 = vmatmul.f32.gmra.mxu0 %v426
        %v546 = vpop.f32.mrf.mxu0
        %v547 = vadd.f32 %v522, %v546
        %548 = vmatmul.f32.gmra.mxu0 %v428
        %v549 = vpop.f32.mrf.mxu0
        %v550 = vadd.f32 %v522, %v549
        %551 = vmatmul.f32.gmra.mxu0 %v430
        %v552 = vpop.f32.mrf.mxu0
        %v553 = vadd.f32 %v522, %v552
        %554 = vmatmul.f32.gmra.mxu0 %v432
        %v555 = vpop.f32.mrf.mxu0
        %v556 = vadd.f32 %v522, %v555
        %557 = vmatmul.f32.gmra.mxu0 %v434
        %v558 = vpop.f32.mrf.mxu0
        %v559 = vadd.f32 %v522, %v558
        %560 = vmatmul.f32.gmra.mxu0 %v436
        %v561 = vpop.f32.mrf.mxu0
        %v562 = vadd.f32 %v522, %v561
        %563 = vmatmul.f32.gmra.mxu0 %v438
        %v564 = vpop.f32.mrf.mxu0
        %v565 = vadd.f32 %v522, %v564
        %566 = vmatmul.f32.gmra.mxu0 %v440
        %v567 = vpop.f32.mrf.mxu0
        %v568 = vadd.f32 %v522, %v567
        %569 = vmatmul.f32.gmra.mxu0 %v442
        %v570 = vpop.f32.mrf.mxu0
        %v571 = vadd.f32 %v522, %v570
        %572 = vmatmul.f32.gmra.mxu0 %v444
        %v573 = vpop.f32.mrf.mxu0
        %v574 = vadd.f32 %v522, %v573
        %575 = vmatmul.f32.gmra.mxu0 %v446
        %v576 = vpop.f32.mrf.mxu0
        %v577 = vadd.f32 %v522, %v576
        %578 = vmatmul.f32.gmra.mxu0 %v448
        %v579 = vpop.f32.mrf.mxu0
        %v580 = vadd.f32 %v522, %v579
        %581 = vmatmul.f32.gmra.mxu0 %v450
        %v582 = vpop.f32.mrf.mxu0
        %v583 = vadd.f32 %v522, %v582
        %584 = vmatmul.f32.gmra.mxu0 %v452
        %v585 = vpop.f32.mrf.mxu0
        %v586 = vadd.f32 %v522, %v585
        %587 = vmatmul.f32.gmra.mxu0 %v454
        %v588 = vpop.f32.mrf.mxu0
        %v589 = vadd.f32 %v522, %v588
        %590 = vdwg.mxu0
        %591 = vmatpush.msra.mxu0 %v518
        %592 = vmatpush.msra.mxu0 %v516
        %593 = vmatpush.msra.mxu0 %v514
        %594 = vmatpush.msra.mxu0 %v512
        %595 = vmatpush.msra.mxu0 %v510
        %596 = vmatpush.msra.mxu0 %v508
        %597 = vmatpush.msra.mxu0 %v506
        %598 = vmatpush.msra.mxu0 %v504
        %599 = vmatpush.msra.mxu0 %v502
        %600 = vmatpush.msra.mxu0 %v500
        %601 = vmatpush.msra.mxu0 %v498
        %602 = vmatpush.msra.mxu0 %v496
        %603 = vmatpush.msra.mxu0 %v494
        %604 = vmatpush.msra.mxu0 %v492
        %605 = vmatpush.msra.mxu0 %v490
        %606 = vmatpush.msra.mxu0 %v488
        %607 = vmatmul.f32.gmra.mxu0 %v425
        %v608 = vpop.f32.mrf.mxu0
        %v609 = vadd.f32 %v544, %v608
        %610 = vmatmul.f32.gmra.mxu0 %v427
        %v611 = vpop.f32.mrf.mxu0
        %v612 = vadd.f32 %v547, %v611
        %613 = vmatmul.f32.gmra.mxu0 %v429
        %v614 = vpop.f32.mrf.mxu0
        %v615 = vadd.f32 %v550, %v614
        %616 = vmatmul.f32.gmra.mxu0 %v431
        %v617 = vpop.f32.mrf.mxu0
        %v618 = vadd.f32 %v553, %v617
        %619 = vmatmul.f32.gmra.mxu0 %v433
        %v620 = vpop.f32.mrf.mxu0
        %v621 = vadd.f32 %v556, %v620
        %622 = vmatmul.f32.gmra.mxu0 %v435
        %v623 = vpop.f32.mrf.mxu0
        %v624 = vadd.f32 %v559, %v623
        %625 = vmatmul.f32.gmra.mxu0 %v437
        %v626 = vpop.f32.mrf.mxu0
        %v627 = vadd.f32 %v562, %v626
        %628 = vmatmul.f32.gmra.mxu0 %v439
        %v629 = vpop.f32.mrf.mxu0
        %v630 = vadd.f32 %v565, %v629
        %631 = vmatmul.f32.gmra.mxu0 %v441
        %v632 = vpop.f32.mrf.mxu0
        %v633 = vadd.f32 %v568, %v632
        %634 = vmatmul.f32.gmra.mxu0 %v443
        %v635 = vpop.f32.mrf.mxu0
        %v636 = vadd.f32 %v571, %v635
        %637 = vmatmul.f32.gmra.mxu0 %v445
        %v638 = vpop.f32.mrf.mxu0
        %v639 = vadd.f32 %v574, %v638
        %640 = vmatmul.f32.gmra.mxu0 %v447
        %v641 = vpop.f32.mrf.mxu0
        %v642 = vadd.f32 %v577, %v641
        %643 = vmatmul.f32.gmra.mxu0 %v449
        %v644 = vpop.f32.mrf.mxu0
        %v645 = vadd.f32 %v580, %v644
        %646 = vmatmul.f32.gmra.mxu0 %v451
        %v647 = vpop.f32.mrf.mxu0
        %v648 = vadd.f32 %v583, %v647
        %649 = vmatmul.f32.gmra.mxu0 %v453
        %v650 = vpop.f32.mrf.mxu0
        %v651 = vadd.f32 %v586, %v650
        %652 = vmatmul.f32.gmra.mxu0 %v455
        %v653 = vpop.f32.mrf.mxu0
        %v654 = vadd.f32 %v589, %v653
        %655 = vdwg.mxu0
        %656 = vmatpush.msra.mxu0 %v487
        %657 = vmatpush.msra.mxu0 %v485
        %658 = vmatpush.msra.mxu0 %v483
        %659 = vmatpush.msra.mxu0 %v481
        %660 = vmatpush.msra.mxu0 %v479
        %661 = vmatpush.msra.mxu0 %v477
        %662 = vmatpush.msra.mxu0 %v475
        %663 = vmatpush.msra.mxu0 %v473
        %664 = vmatpush.msra.mxu0 %v471
        %665 = vmatpush.msra.mxu0 %v469
        %666 = vmatpush.msra.mxu0 %v467
        %667 = vmatpush.msra.mxu0 %v465
        %668 = vmatpush.msra.mxu0 %v463
        %669 = vmatpush.msra.mxu0 %v461
        %670 = vmatpush.msra.mxu0 %v459
        %671 = vmatpush.msra.mxu0 %v457
        %672 = vmatmul.f32.gmra.mxu0 %v424
        %v673 = vpop.f32.mrf.mxu0
        %v674 = vadd.f32 %v523, %v673
        %675 = vmatmul.f32.gmra.mxu0 %v426
        %v676 = vpop.f32.mrf.mxu0
        %v677 = vadd.f32 %v523, %v676
        %678 = vmatmul.f32.gmra.mxu0 %v428
        %v679 = vpop.f32.mrf.mxu0
        %v680 = vadd.f32 %v523, %v679
        %681 = vmatmul.f32.gmra.mxu0 %v430
        %v682 = vpop.f32.mrf.mxu0
        %v683 = vadd.f32 %v523, %v682
        %684 = vmatmul.f32.gmra.mxu0 %v432
        %v685 = vpop.f32.mrf.mxu0
        %v686 = vadd.f32 %v523, %v685
        %687 = vmatmul.f32.gmra.mxu0 %v434
        %v688 = vpop.f32.mrf.mxu0
        %v689 = vadd.f32 %v523, %v688
        %690 = vmatmul.f32.gmra.mxu0 %v436
        %v691 = vpop.f32.mrf.mxu0
        %v692 = vadd.f32 %v523, %v691
        %693 = vmatmul.f32.gmra.mxu0 %v438
        %v694 = vpop.f32.mrf.mxu0
        %v695 = vadd.f32 %v523, %v694
        %696 = vmatmul.f32.gmra.mxu0 %v440
        %v697 = vpop.f32.mrf.mxu0
        %v698 = vadd.f32 %v523, %v697
        %699 = vmatmul.f32.gmra.mxu0 %v442
        %v700 = vpop.f32.mrf.mxu0
        %v701 = vadd.f32 %v523, %v700
        %702 = vmatmul.f32.gmra.mxu0 %v444
        %v703 = vpop.f32.mrf.mxu0
        %v704 = vadd.f32 %v523, %v703
        %705 = vmatmul.f32.gmra.mxu0 %v446
        %v706 = vpop.f32.mrf.mxu0
        %v707 = vadd.f32 %v523, %v706
        %708 = vmatmul.f32.gmra.mxu0 %v448
        %v709 = vpop.f32.mrf.mxu0
        %v710 = vadd.f32 %v523, %v709
        %711 = vmatmul.f32.gmra.mxu0 %v450
        %v712 = vpop.f32.mrf.mxu0
        %v713 = vadd.f32 %v523, %v712
        %714 = vmatmul.f32.gmra.mxu0 %v452
        %v715 = vpop.f32.mrf.mxu0
        %v716 = vadd.f32 %v523, %v715
        %717 = vmatmul.f32.gmra.mxu0 %v454
        %v718 = vpop.f32.mrf.mxu0
        %v719 = vadd.f32 %v523, %v718
        %720 = vdwg.mxu0
        %721 = vmatpush.msra.mxu0 %v519
        %722 = vmatpush.msra.mxu0 %v517
        %723 = vmatpush.msra.mxu0 %v515
        %724 = vmatpush.msra.mxu0 %v513
        %725 = vmatpush.msra.mxu0 %v511
        %726 = vmatpush.msra.mxu0 %v509
        %727 = vmatpush.msra.mxu0 %v507
        %728 = vmatpush.msra.mxu0 %v505
        %729 = vmatpush.msra.mxu0 %v503
        %730 = vmatpush.msra.mxu0 %v501
        %731 = vmatpush.msra.mxu0 %v499
        %732 = vmatpush.msra.mxu0 %v497
        %733 = vmatpush.msra.mxu0 %v495
        %734 = vmatpush.msra.mxu0 %v493
        %735 = vmatpush.msra.mxu0 %v491
        %736 = vmatpush.msra.mxu0 %v489
        %737 = vmatmul.f32.gmra.mxu0 %v425
        %v738 = vpop.f32.mrf.mxu0
        %v739 = vadd.f32 %v674, %v738
        %740 = vmatmul.f32.gmra.mxu0 %v427
        %v741 = vpop.f32.mrf.mxu0
        %v742 = vadd.f32 %v677, %v741
        %743 = vmatmul.f32.gmra.mxu0 %v429
        %v744 = vpop.f32.mrf.mxu0
        %v745 = vadd.f32 %v680, %v744
        %746 = vmatmul.f32.gmra.mxu0 %v431
        %v747 = vpop.f32.mrf.mxu0
        %v748 = vadd.f32 %v683, %v747
        %749 = vmatmul.f32.gmra.mxu0 %v433
        %v750 = vpop.f32.mrf.mxu0
        %v751 = vadd.f32 %v686, %v750
        %752 = vmatmul.f32.gmra.mxu0 %v435
        %v753 = vpop.f32.mrf.mxu0
        %v754 = vadd.f32 %v689, %v753
        %755 = vmatmul.f32.gmra.mxu0 %v437
        %v756 = vpop.f32.mrf.mxu0
        %v757 = vadd.f32 %v692, %v756
        %758 = vmatmul.f32.gmra.mxu0 %v439
        %v759 = vpop.f32.mrf.mxu0
        %v760 = vadd.f32 %v695, %v759
        %761 = vmatmul.f32.gmra.mxu0 %v441
        %v762 = vpop.f32.mrf.mxu0
        %v763 = vadd.f32 %v698, %v762
        %764 = vmatmul.f32.gmra.mxu0 %v443
        %v765 = vpop.f32.mrf.mxu0
        %v766 = vadd.f32 %v701, %v765
        %767 = vmatmul.f32.gmra.mxu0 %v445
        %v768 = vpop.f32.mrf.mxu0
        %v769 = vadd.f32 %v704, %v768
        %770 = vmatmul.f32.gmra.mxu0 %v447
        %v771 = vpop.f32.mrf.mxu0
        %v772 = vadd.f32 %v707, %v771
        %773 = vmatmul.f32.gmra.mxu0 %v449
        %v774 = vpop.f32.mrf.mxu0
        %v775 = vadd.f32 %v710, %v774
        %776 = vmatmul.f32.gmra.mxu0 %v451
        %v777 = vpop.f32.mrf.mxu0
        %v778 = vadd.f32 %v713, %v777
        %779 = vmatmul.f32.gmra.mxu0 %v453
        %v780 = vpop.f32.mrf.mxu0
        %v781 = vadd.f32 %v716, %v780
        %782 = vmatmul.f32.gmra.mxu0 %v455
        %v783 = vpop.f32.mrf.mxu0
        %v784 = vadd.f32 %v719, %v783
        %785 = vdwg.mxu0
        %vm786 = vcmp.gt.f32.partialorder %v609, 20.0
        %vm787 = vcmp.gt.f32.partialorder %v739, 20.0
        %vm788 = vcmp.gt.f32.partialorder %v612, 20.0
        %vm789 = vcmp.gt.f32.partialorder %v742, 20.0
        %vm790 = vcmp.gt.f32.partialorder %v615, 20.0
        %vm791 = vcmp.gt.f32.partialorder %v745, 20.0
        %vm792 = vcmp.gt.f32.partialorder %v618, 20.0
        %vm793 = vcmp.gt.f32.partialorder %v748, 20.0
        %vm794 = vcmp.gt.f32.partialorder %v621, 20.0
        %vm795 = vcmp.gt.f32.partialorder %v751, 20.0
        %vm796 = vcmp.gt.f32.partialorder %v624, 20.0
        %vm797 = vcmp.gt.f32.partialorder %v754, 20.0
        %vm798 = vcmp.gt.f32.partialorder %v627, 20.0
        %vm799 = vcmp.gt.f32.partialorder %v757, 20.0
        %vm800 = vcmp.gt.f32.partialorder %v630, 20.0
        %vm801 = vcmp.gt.f32.partialorder %v760, 20.0
        %vm802 = vcmp.gt.f32.partialorder %v633, 20.0
        %vm803 = vcmp.gt.f32.partialorder %v763, 20.0
        %vm804 = vcmp.gt.f32.partialorder %v636, 20.0
        %vm805 = vcmp.gt.f32.partialorder %v766, 20.0
        %vm806 = vcmp.gt.f32.partialorder %v639, 20.0
        %vm807 = vcmp.gt.f32.partialorder %v769, 20.0
        %vm808 = vcmp.gt.f32.partialorder %v642, 20.0
        %vm809 = vcmp.gt.f32.partialorder %v772, 20.0
        %vm810 = vcmp.gt.f32.partialorder %v645, 20.0
        %vm811 = vcmp.gt.f32.partialorder %v775, 20.0
        %vm812 = vcmp.gt.f32.partialorder %v648, 20.0
        %vm813 = vcmp.gt.f32.partialorder %v778, 20.0
        %vm814 = vcmp.gt.f32.partialorder %v651, 20.0
        %vm815 = vcmp.gt.f32.partialorder %v781, 20.0
        %vm816 = vcmp.gt.f32.partialorder %v654, 20.0
        %vm817 = vcmp.gt.f32.partialorder %v784, 20.0
        %v818 = vmul.f32 %v609, 1.442695
        %v819 = vpow.pop %v818
        %v820 = vmul.f32 %v739, 1.442695
        %v821 = vpow.pop %v820
        %v822 = vmul.f32 %v612, 1.442695
        %v823 = vpow.pop %v822
        %v824 = vmul.f32 %v742, 1.442695
        %v825 = vpow.pop %v824
        %v826 = vmul.f32 %v615, 1.442695
        %v827 = vpow.pop %v826
        %v828 = vmul.f32 %v745, 1.442695
        %v829 = vpow.pop %v828
        %v830 = vmul.f32 %v618, 1.442695
        %v831 = vpow.pop %v830
        %v832 = vmul.f32 %v748, 1.442695
        %v833 = vpow.pop %v832
        %v834 = vmul.f32 %v621, 1.442695
        %v835 = vpow.pop %v834
        %v836 = vmul.f32 %v751, 1.442695
        %v837 = vpow.pop %v836
        %v838 = vmul.f32 %v624, 1.442695
        %v839 = vpow.pop %v838
        %v840 = vmul.f32 %v754, 1.442695
        %v841 = vpow.pop %v840
        %v842 = vmul.f32 %v627, 1.442695
        %v843 = vpow.pop %v842
        %v844 = vmul.f32 %v757, 1.442695
        %v845 = vpow.pop %v844
        %v846 = vmul.f32 %v630, 1.442695
        %v847 = vpow.pop %v846
        %v848 = vmul.f32 %v760, 1.442695
        %v849 = vpow.pop %v848
        %v850 = vmul.f32 %v633, 1.442695
        %v851 = vpow.pop %v850
        %v852 = vmul.f32 %v763, 1.442695
        %v853 = vpow.pop %v852
        %v854 = vmul.f32 %v636, 1.442695
        %v855 = vpow.pop %v854
        %v856 = vmul.f32 %v766, 1.442695
        %v857 = vpow.pop %v856
        %v858 = vmul.f32 %v639, 1.442695
        %v859 = vpow.pop %v858
        %v860 = vmul.f32 %v769, 1.442695
        %v861 = vpow.pop %v860
        %v862 = vmul.f32 %v642, 1.442695
        %v863 = vpow.pop %v862
        %v864 = vmul.f32 %v772, 1.442695
        %v865 = vpow.pop %v864
        %v866 = vmul.f32 %v645, 1.442695
        %v867 = vpow.pop %v866
        %v868 = vmul.f32 %v775, 1.442695
        %v869 = vpow.pop %v868
        %v870 = vmul.f32 %v648, 1.442695
        %v871 = vpow.pop %v870
        %v872 = vmul.f32 %v778, 1.442695
        %v873 = vpow.pop %v872
        %v874 = vmul.f32 %v651, 1.442695
        %v875 = vpow.pop %v874
        %v876 = vmul.f32 %v781, 1.442695
        %v877 = vpow.pop %v876
        %v878 = vmul.f32 %v654, 1.442695
        %v879 = vpow.pop %v878
        %v880 = vmul.f32 %v784, 1.442695
        %v881 = vpow.pop %v880
        %v882 = vadd.f32 %v819, 1.0
        %v883 = vlog2.pop %v882
        %v884 = vmul.f32 %v883, 0.6931472
        %v885 = vmul.f32 -0.5, %v819
        %v886 = vadd.f32 %v885, 1.0
        %v887 = vmul.f32 %v886, %v819
        %v888 = vand.u32 2147483647, %v819
        %vm889 = vcmp.lt.f32.partialorder %v888, 0.0004427343
        %v890 = vsel %vm889, %v887, %v884
        %v891 = vadd.f32 %v821, 1.0
        %v892 = vlog2.pop %v891
        %v893 = vmul.f32 %v892, 0.6931472
        %v894 = vmul.f32 -0.5, %v821
        %v895 = vadd.f32 %v894, 1.0
        %v896 = vmul.f32 %v895, %v821
        %v897 = vand.u32 2147483647, %v821
        %vm898 = vcmp.lt.f32.partialorder %v897, 0.0004427343
        %v899 = vsel %vm898, %v896, %v893
        %v900 = vadd.f32 %v823, 1.0
        %v901 = vlog2.pop %v900
        %v902 = vmul.f32 %v901, 0.6931472
        %v903 = vmul.f32 -0.5, %v823
        %v904 = vadd.f32 %v903, 1.0
        %v905 = vmul.f32 %v904, %v823
        %v906 = vand.u32 2147483647, %v823
        %vm907 = vcmp.lt.f32.partialorder %v906, 0.0004427343
        %v908 = vsel %vm907, %v905, %v902
        %v909 = vadd.f32 %v825, 1.0
        %v910 = vlog2.pop %v909
        %v911 = vmul.f32 %v910, 0.6931472
        %v912 = vmul.f32 -0.5, %v825
        %v913 = vadd.f32 %v912, 1.0
        %v914 = vmul.f32 %v913, %v825
        %v915 = vand.u32 2147483647, %v825
        %vm916 = vcmp.lt.f32.partialorder %v915, 0.0004427343
        %v917 = vsel %vm916, %v914, %v911
        %v918 = vadd.f32 %v827, 1.0
        %v919 = vlog2.pop %v918
        %v920 = vmul.f32 %v919, 0.6931472
        %v921 = vmul.f32 -0.5, %v827
        %v922 = vadd.f32 %v921, 1.0
        %v923 = vmul.f32 %v922, %v827
        %v924 = vand.u32 2147483647, %v827
        %vm925 = vcmp.lt.f32.partialorder %v924, 0.0004427343
        %v926 = vsel %vm925, %v923, %v920
        %v927 = vadd.f32 %v829, 1.0
        %v928 = vlog2.pop %v927
        %v929 = vmul.f32 %v928, 0.6931472
        %v930 = vmul.f32 -0.5, %v829
        %v931 = vadd.f32 %v930, 1.0
        %v932 = vmul.f32 %v931, %v829
        %v933 = vand.u32 2147483647, %v829
        %vm934 = vcmp.lt.f32.partialorder %v933, 0.0004427343
        %v935 = vsel %vm934, %v932, %v929
        %v936 = vadd.f32 %v831, 1.0
        %v937 = vlog2.pop %v936
        %v938 = vmul.f32 %v937, 0.6931472
        %v939 = vmul.f32 -0.5, %v831
        %v940 = vadd.f32 %v939, 1.0
        %v941 = vmul.f32 %v940, %v831
        %v942 = vand.u32 2147483647, %v831
        %vm943 = vcmp.lt.f32.partialorder %v942, 0.0004427343
        %v944 = vsel %vm943, %v941, %v938
        %v945 = vadd.f32 %v833, 1.0
        %v946 = vlog2.pop %v945
        %v947 = vmul.f32 %v946, 0.6931472
        %v948 = vmul.f32 -0.5, %v833
        %v949 = vadd.f32 %v948, 1.0
        %v950 = vmul.f32 %v949, %v833
        %v951 = vand.u32 2147483647, %v833
        %vm952 = vcmp.lt.f32.partialorder %v951, 0.0004427343
        %v953 = vsel %vm952, %v950, %v947
        %v954 = vadd.f32 %v835, 1.0
        %v955 = vlog2.pop %v954
        %v956 = vmul.f32 %v955, 0.6931472
        %v957 = vmul.f32 -0.5, %v835
        %v958 = vadd.f32 %v957, 1.0
        %v959 = vmul.f32 %v958, %v835
        %v960 = vand.u32 2147483647, %v835
        %vm961 = vcmp.lt.f32.partialorder %v960, 0.0004427343
        %v962 = vsel %vm961, %v959, %v956
        %v963 = vadd.f32 %v837, 1.0
        %v964 = vlog2.pop %v963
        %v965 = vmul.f32 %v964, 0.6931472
        %v966 = vmul.f32 -0.5, %v837
        %v967 = vadd.f32 %v966, 1.0
        %v968 = vmul.f32 %v967, %v837
        %v969 = vand.u32 2147483647, %v837
        %vm970 = vcmp.lt.f32.partialorder %v969, 0.0004427343
        %v971 = vsel %vm970, %v968, %v965
        %v972 = vadd.f32 %v839, 1.0
        %v973 = vlog2.pop %v972
        %v974 = vmul.f32 %v973, 0.6931472
        %v975 = vmul.f32 -0.5, %v839
        %v976 = vadd.f32 %v975, 1.0
        %v977 = vmul.f32 %v976, %v839
        %v978 = vand.u32 2147483647, %v839
        %vm979 = vcmp.lt.f32.partialorder %v978, 0.0004427343
        %v980 = vsel %vm979, %v977, %v974
        %v981 = vadd.f32 %v841, 1.0
        %v982 = vlog2.pop %v981
        %v983 = vmul.f32 %v982, 0.6931472
        %v984 = vmul.f32 -0.5, %v841
        %v985 = vadd.f32 %v984, 1.0
        %v986 = vmul.f32 %v985, %v841
        %v987 = vand.u32 2147483647, %v841
        %vm988 = vcmp.lt.f32.partialorder %v987, 0.0004427343
        %v989 = vsel %vm988, %v986, %v983
        %v990 = vadd.f32 %v843, 1.0
        %v991 = vlog2.pop %v990
        %v992 = vmul.f32 %v991, 0.6931472
        %v993 = vmul.f32 -0.5, %v843
        %v994 = vadd.f32 %v993, 1.0
        %v995 = vmul.f32 %v994, %v843
        %v996 = vand.u32 2147483647, %v843
        %vm997 = vcmp.lt.f32.partialorder %v996, 0.0004427343
        %v998 = vsel %vm997, %v995, %v992
        %v999 = vadd.f32 %v845, 1.0
        %v1000 = vlog2.pop %v999
        %v1001 = vmul.f32 %v1000, 0.6931472
        %v1002 = vmul.f32 -0.5, %v845
        %v1003 = vadd.f32 %v1002, 1.0
        %v1004 = vmul.f32 %v1003, %v845
        %v1005 = vand.u32 2147483647, %v845
        %vm1006 = vcmp.lt.f32.partialorder %v1005, 0.0004427343
        %v1007 = vsel %vm1006, %v1004, %v1001
        %v1008 = vadd.f32 %v847, 1.0
        %v1009 = vlog2.pop %v1008
        %v1010 = vmul.f32 %v1009, 0.6931472
        %v1011 = vmul.f32 -0.5, %v847
        %v1012 = vadd.f32 %v1011, 1.0
        %v1013 = vmul.f32 %v1012, %v847
        %v1014 = vand.u32 2147483647, %v847
        %vm1015 = vcmp.lt.f32.partialorder %v1014, 0.0004427343
        %v1016 = vsel %vm1015, %v1013, %v1010
        %v1017 = vadd.f32 %v849, 1.0
        %v1018 = vlog2.pop %v1017
        %v1019 = vmul.f32 %v1018, 0.6931472
        %v1020 = vmul.f32 -0.5, %v849
        %v1021 = vadd.f32 %v1020, 1.0
        %v1022 = vmul.f32 %v1021, %v849
        %v1023 = vand.u32 2147483647, %v849
        %vm1024 = vcmp.lt.f32.partialorder %v1023, 0.0004427343
        %v1025 = vsel %vm1024, %v1022, %v1019
        %v1026 = vadd.f32 %v851, 1.0
        %v1027 = vlog2.pop %v1026
        %v1028 = vmul.f32 %v1027, 0.6931472
        %v1029 = vmul.f32 -0.5, %v851
        %v1030 = vadd.f32 %v1029, 1.0
        %v1031 = vmul.f32 %v1030, %v851
        %v1032 = vand.u32 2147483647, %v851
        %vm1033 = vcmp.lt.f32.partialorder %v1032, 0.0004427343
        %v1034 = vsel %vm1033, %v1031, %v1028
        %v1035 = vadd.f32 %v853, 1.0
        %v1036 = vlog2.pop %v1035
        %v1037 = vmul.f32 %v1036, 0.6931472
        %v1038 = vmul.f32 -0.5, %v853
        %v1039 = vadd.f32 %v1038, 1.0
        %v1040 = vmul.f32 %v1039, %v853
        %v1041 = vand.u32 2147483647, %v853
        %vm1042 = vcmp.lt.f32.partialorder %v1041, 0.0004427343
        %v1043 = vsel %vm1042, %v1040, %v1037
        %v1044 = vadd.f32 %v855, 1.0
        %v1045 = vlog2.pop %v1044
        %v1046 = vmul.f32 %v1045, 0.6931472
        %v1047 = vmul.f32 -0.5, %v855
        %v1048 = vadd.f32 %v1047, 1.0
        %v1049 = vmul.f32 %v1048, %v855
        %v1050 = vand.u32 2147483647, %v855
        %vm1051 = vcmp.lt.f32.partialorder %v1050, 0.0004427343
        %v1052 = vsel %vm1051, %v1049, %v1046
        %v1053 = vadd.f32 %v857, 1.0
        %v1054 = vlog2.pop %v1053
        %v1055 = vmul.f32 %v1054, 0.6931472
        %v1056 = vmul.f32 -0.5, %v857
        %v1057 = vadd.f32 %v1056, 1.0
        %v1058 = vmul.f32 %v1057, %v857
        %v1059 = vand.u32 2147483647, %v857
        %vm1060 = vcmp.lt.f32.partialorder %v1059, 0.0004427343
        %v1061 = vsel %vm1060, %v1058, %v1055
        %v1062 = vadd.f32 %v859, 1.0
        %v1063 = vlog2.pop %v1062
        %v1064 = vmul.f32 %v1063, 0.6931472
        %v1065 = vmul.f32 -0.5, %v859
        %v1066 = vadd.f32 %v1065, 1.0
        %v1067 = vmul.f32 %v1066, %v859
        %v1068 = vand.u32 2147483647, %v859
        %vm1069 = vcmp.lt.f32.partialorder %v1068, 0.0004427343
        %v1070 = vsel %vm1069, %v1067, %v1064
        %v1071 = vadd.f32 %v861, 1.0
        %v1072 = vlog2.pop %v1071
        %v1073 = vmul.f32 %v1072, 0.6931472
        %v1074 = vmul.f32 -0.5, %v861
        %v1075 = vadd.f32 %v1074, 1.0
        %v1076 = vmul.f32 %v1075, %v861
        %v1077 = vand.u32 2147483647, %v861
        %vm1078 = vcmp.lt.f32.partialorder %v1077, 0.0004427343
        %v1079 = vsel %vm1078, %v1076, %v1073
        %v1080 = vadd.f32 %v863, 1.0
        %v1081 = vlog2.pop %v1080
        %v1082 = vmul.f32 %v1081, 0.6931472
        %v1083 = vmul.f32 -0.5, %v863
        %v1084 = vadd.f32 %v1083, 1.0
        %v1085 = vmul.f32 %v1084, %v863
        %v1086 = vand.u32 2147483647, %v863
        %vm1087 = vcmp.lt.f32.partialorder %v1086, 0.0004427343
        %v1088 = vsel %vm1087, %v1085, %v1082
        %v1089 = vadd.f32 %v865, 1.0
        %v1090 = vlog2.pop %v1089
        %v1091 = vmul.f32 %v1090, 0.6931472
        %v1092 = vmul.f32 -0.5, %v865
        %v1093 = vadd.f32 %v1092, 1.0
        %v1094 = vmul.f32 %v1093, %v865
        %v1095 = vand.u32 2147483647, %v865
        %vm1096 = vcmp.lt.f32.partialorder %v1095, 0.0004427343
        %v1097 = vsel %vm1096, %v1094, %v1091
        %v1098 = vadd.f32 %v867, 1.0
        %v1099 = vlog2.pop %v1098
        %v1100 = vmul.f32 %v1099, 0.6931472
        %v1101 = vmul.f32 -0.5, %v867
        %v1102 = vadd.f32 %v1101, 1.0
        %v1103 = vmul.f32 %v1102, %v867
        %v1104 = vand.u32 2147483647, %v867
        %vm1105 = vcmp.lt.f32.partialorder %v1104, 0.0004427343
        %v1106 = vsel %vm1105, %v1103, %v1100
        %v1107 = vadd.f32 %v869, 1.0
        %v1108 = vlog2.pop %v1107
        %v1109 = vmul.f32 %v1108, 0.6931472
        %v1110 = vmul.f32 -0.5, %v869
        %v1111 = vadd.f32 %v1110, 1.0
        %v1112 = vmul.f32 %v1111, %v869
        %v1113 = vand.u32 2147483647, %v869
        %vm1114 = vcmp.lt.f32.partialorder %v1113, 0.0004427343
        %v1115 = vsel %vm1114, %v1112, %v1109
        %v1116 = vadd.f32 %v871, 1.0
        %v1117 = vlog2.pop %v1116
        %v1118 = vmul.f32 %v1117, 0.6931472
        %v1119 = vmul.f32 -0.5, %v871
        %v1120 = vadd.f32 %v1119, 1.0
        %v1121 = vmul.f32 %v1120, %v871
        %v1122 = vand.u32 2147483647, %v871
        %vm1123 = vcmp.lt.f32.partialorder %v1122, 0.0004427343
        %v1124 = vsel %vm1123, %v1121, %v1118
        %v1125 = vadd.f32 %v873, 1.0
        %v1126 = vlog2.pop %v1125
        %v1127 = vmul.f32 %v1126, 0.6931472
        %v1128 = vmul.f32 -0.5, %v873
        %v1129 = vadd.f32 %v1128, 1.0
        %v1130 = vmul.f32 %v1129, %v873
        %v1131 = vand.u32 2147483647, %v873
        %vm1132 = vcmp.lt.f32.partialorder %v1131, 0.0004427343
        %v1133 = vsel %vm1132, %v1130, %v1127
        %v1134 = vadd.f32 %v875, 1.0
        %v1135 = vlog2.pop %v1134
        %v1136 = vmul.f32 %v1135, 0.6931472
        %v1137 = vmul.f32 -0.5, %v875
        %v1138 = vadd.f32 %v1137, 1.0
        %v1139 = vmul.f32 %v1138, %v875
        %v1140 = vand.u32 2147483647, %v875
        %vm1141 = vcmp.lt.f32.partialorder %v1140, 0.0004427343
        %v1142 = vsel %vm1141, %v1139, %v1136
        %v1143 = vadd.f32 %v877, 1.0
        %v1144 = vlog2.pop %v1143
        %v1145 = vmul.f32 %v1144, 0.6931472
        %v1146 = vmul.f32 -0.5, %v877
        %v1147 = vadd.f32 %v1146, 1.0
        %v1148 = vmul.f32 %v1147, %v877
        %v1149 = vand.u32 2147483647, %v877
        %vm1150 = vcmp.lt.f32.partialorder %v1149, 0.0004427343
        %v1151 = vsel %vm1150, %v1148, %v1145
        %v1152 = vadd.f32 %v879, 1.0
        %v1153 = vlog2.pop %v1152
        %v1154 = vmul.f32 %v1153, 0.6931472
        %v1155 = vmul.f32 -0.5, %v879
        %v1156 = vadd.f32 %v1155, 1.0
        %v1157 = vmul.f32 %v1156, %v879
        %v1158 = vand.u32 2147483647, %v879
        %vm1159 = vcmp.lt.f32.partialorder %v1158, 0.0004427343
        %v1160 = vsel %vm1159, %v1157, %v1154
        %v1161 = vadd.f32 %v881, 1.0
        %v1162 = vlog2.pop %v1161
        %v1163 = vmul.f32 %v1162, 0.6931472
        %v1164 = vmul.f32 -0.5, %v881
        %v1165 = vadd.f32 %v1164, 1.0
        %v1166 = vmul.f32 %v1165, %v881
        %v1167 = vand.u32 2147483647, %v881
        %vm1168 = vcmp.lt.f32.partialorder %v1167, 0.0004427343
        %v1169 = vsel %vm1168, %v1166, %v1163
        %v1170 = vsel %vm786, %v609, %v890
        %v1171 = vsel %vm787, %v739, %v899
        %v1172 = vsel %vm788, %v612, %v908
        %v1173 = vsel %vm789, %v742, %v917
        %v1174 = vsel %vm790, %v615, %v926
        %v1175 = vsel %vm791, %v745, %v935
        %v1176 = vsel %vm792, %v618, %v944
        %v1177 = vsel %vm793, %v748, %v953
        %v1178 = vsel %vm794, %v621, %v962
        %v1179 = vsel %vm795, %v751, %v971
        %v1180 = vsel %vm796, %v624, %v980
        %v1181 = vsel %vm797, %v754, %v989
        %v1182 = vsel %vm798, %v627, %v998
        %v1183 = vsel %vm799, %v757, %v1007
        %v1184 = vsel %vm800, %v630, %v1016
        %v1185 = vsel %vm801, %v760, %v1025
        %v1186 = vsel %vm802, %v633, %v1034
        %v1187 = vsel %vm803, %v763, %v1043
        %v1188 = vsel %vm804, %v636, %v1052
        %v1189 = vsel %vm805, %v766, %v1061
        %v1190 = vsel %vm806, %v639, %v1070
        %v1191 = vsel %vm807, %v769, %v1079
        %v1192 = vsel %vm808, %v642, %v1088
        %v1193 = vsel %vm809, %v772, %v1097
        %v1194 = vsel %vm810, %v645, %v1106
        %v1195 = vsel %vm811, %v775, %v1115
        %v1196 = vsel %vm812, %v648, %v1124
        %v1197 = vsel %vm813, %v778, %v1133
        %v1198 = vsel %vm814, %v651, %v1142
        %v1199 = vsel %vm815, %v781, %v1151
        %v1200 = vsel %vm816, %v654, %v1160
        %v1201 = vsel %vm817, %v784, %v1169
        %v1202 = vld [vmem:[%s362] sm:$0xff]
        %v1203 = vld [vmem:[%s362 + $0x8] sm:$0xff]
        %v1204 = vld [vmem:[%s362 + $0x10] sm:$0xff]
        %v1205 = vld [vmem:[%s362 + $0x18] sm:$0xff]
        %v1206 = vld [vmem:[%s362 + $0x20] sm:$0xff]
        %v1207 = vld [vmem:[%s362 + $0x28] sm:$0xff]
        %v1208 = vld [vmem:[%s362 + $0x30] sm:$0xff]
        %v1209 = vld [vmem:[%s362 + $0x38] sm:$0xff]
        %v1210 = vld [vmem:[%s362 + $0x40] sm:$0xff]
        %v1211 = vld [vmem:[%s362 + $0x48] sm:$0xff]
        %v1212 = vld [vmem:[%s362 + $0x50] sm:$0xff]
        %v1213 = vld [vmem:[%s362 + $0x58] sm:$0xff]
        %v1214 = vld [vmem:[%s362 + $0x60] sm:$0xff]
        %v1215 = vld [vmem:[%s362 + $0x68] sm:$0xff]
        %v1216 = vld [vmem:[%s362 + $0x70] sm:$0xff]
        %v1217 = vld [vmem:[%s362 + $0x78] sm:$0xff]
        %v1218 = vld [vmem:[%s362 + $0x80] sm:$0xff]
        %v1219 = vld [vmem:[%s362 + $0x88] sm:$0xff]
        %v1220 = vld [vmem:[%s362 + $0x90] sm:$0xff]
        %v1221 = vld [vmem:[%s362 + $0x98] sm:$0xff]
        %v1222 = vld [vmem:[%s362 + $0xa0] sm:$0xff]
        %v1223 = vld [vmem:[%s362 + $0xa8] sm:$0xff]
        %v1224 = vld [vmem:[%s362 + $0xb0] sm:$0xff]
        %v1225 = vld [vmem:[%s362 + $0xb8] sm:$0xff]
        %v1226 = vld [vmem:[%s362 + $0xc0] sm:$0xff]
        %v1227 = vld [vmem:[%s362 + $0xc8] sm:$0xff]
        %v1228 = vld [vmem:[%s362 + $0xd0] sm:$0xff]
        %v1229 = vld [vmem:[%s362 + $0xd8] sm:$0xff]
        %v1230 = vld [vmem:[%s362 + $0xe0] sm:$0xff]
        %v1231 = vld [vmem:[%s362 + $0xe8] sm:$0xff]
        %v1232 = vld [vmem:[%s362 + $0xf0] sm:$0xff]
        %v1233 = vld [vmem:[%s362 + $0xf8] sm:$0xff]
        %v1234 = vld [vmem:[#allocation7] sm:$0xff]
        %v1235 = vld [vmem:[#allocation7 + $0x8] sm:$0xff]
        %v1236 = vld [vmem:[#allocation7 + $0x10] sm:$0xff]
        %v1237 = vld [vmem:[#allocation7 + $0x18] sm:$0xff]
        %v1238 = vld [vmem:[#allocation7 + $0x20] sm:$0xff]
        %v1239 = vld [vmem:[#allocation7 + $0x28] sm:$0xff]
        %v1240 = vld [vmem:[#allocation7 + $0x30] sm:$0xff]
        %v1241 = vld [vmem:[#allocation7 + $0x38] sm:$0xff]
        %v1242 = vld [vmem:[#allocation7 + $0x40] sm:$0xff]
        %v1243 = vld [vmem:[#allocation7 + $0x48] sm:$0xff]
        %v1244 = vld [vmem:[#allocation7 + $0x50] sm:$0xff]
        %v1245 = vld [vmem:[#allocation7 + $0x58] sm:$0xff]
        %v1246 = vld [vmem:[#allocation7 + $0x60] sm:$0xff]
        %v1247 = vld [vmem:[#allocation7 + $0x68] sm:$0xff]
        %v1248 = vld [vmem:[#allocation7 + $0x70] sm:$0xff]
        %v1249 = vld [vmem:[#allocation7 + $0x78] sm:$0xff]
        %v1250 = vld [vmem:[#allocation7 + $0x80] sm:$0xff]
        %v1251 = vld [vmem:[#allocation7 + $0x88] sm:$0xff]
        %v1252 = vld [vmem:[#allocation7 + $0x90] sm:$0xff]
        %v1253 = vld [vmem:[#allocation7 + $0x98] sm:$0xff]
        %v1254 = vld [vmem:[#allocation7 + $0xa0] sm:$0xff]
        %v1255 = vld [vmem:[#allocation7 + $0xa8] sm:$0xff]
        %v1256 = vld [vmem:[#allocation7 + $0xb0] sm:$0xff]
        %v1257 = vld [vmem:[#allocation7 + $0xb8] sm:$0xff]
        %v1258 = vld [vmem:[#allocation7 + $0xc0] sm:$0xff]
        %v1259 = vld [vmem:[#allocation7 + $0xc8] sm:$0xff]
        %v1260 = vld [vmem:[#allocation7 + $0xd0] sm:$0xff]
        %v1261 = vld [vmem:[#allocation7 + $0xd8] sm:$0xff]
        %v1262 = vld [vmem:[#allocation7 + $0xe0] sm:$0xff]
        %v1263 = vld [vmem:[#allocation7 + $0xe8] sm:$0xff]
        %v1264 = vld [vmem:[#allocation7 + $0xf0] sm:$0xff]
        %v1265 = vld [vmem:[#allocation7 + $0xf8] sm:$0xff]
        %v1266 = vld [vmem:[#allocation7 + $0x100] sm:$0xff]
        %v1267 = vld [vmem:[#allocation7 + $0x108] sm:$0xff]
        %v1268 = vld [vmem:[#allocation7 + $0x110] sm:$0xff]
        %v1269 = vld [vmem:[#allocation7 + $0x118] sm:$0xff]
        %v1270 = vld [vmem:[#allocation7 + $0x120] sm:$0xff]
        %v1271 = vld [vmem:[#allocation7 + $0x128] sm:$0xff]
        %v1272 = vld [vmem:[#allocation7 + $0x130] sm:$0xff]
        %v1273 = vld [vmem:[#allocation7 + $0x138] sm:$0xff]
        %v1274 = vld [vmem:[#allocation7 + $0x140] sm:$0xff]
        %v1275 = vld [vmem:[#allocation7 + $0x148] sm:$0xff]
        %v1276 = vld [vmem:[#allocation7 + $0x150] sm:$0xff]
        %v1277 = vld [vmem:[#allocation7 + $0x158] sm:$0xff]
        %v1278 = vld [vmem:[#allocation7 + $0x160] sm:$0xff]
        %v1279 = vld [vmem:[#allocation7 + $0x168] sm:$0xff]
        %v1280 = vld [vmem:[#allocation7 + $0x170] sm:$0xff]
        %v1281 = vld [vmem:[#allocation7 + $0x178] sm:$0xff]
        %v1282 = vld [vmem:[#allocation7 + $0x180] sm:$0xff]
        %v1283 = vld [vmem:[#allocation7 + $0x188] sm:$0xff]
        %v1284 = vld [vmem:[#allocation7 + $0x190] sm:$0xff]
        %v1285 = vld [vmem:[#allocation7 + $0x198] sm:$0xff]
        %v1286 = vld [vmem:[#allocation7 + $0x1a0] sm:$0xff]
        %v1287 = vld [vmem:[#allocation7 + $0x1a8] sm:$0xff]
        %v1288 = vld [vmem:[#allocation7 + $0x1b0] sm:$0xff]
        %v1289 = vld [vmem:[#allocation7 + $0x1b8] sm:$0xff]
        %v1290 = vld [vmem:[#allocation7 + $0x1c0] sm:$0xff]
        %v1291 = vld [vmem:[#allocation7 + $0x1c8] sm:$0xff]
        %v1292 = vld [vmem:[#allocation7 + $0x1d0] sm:$0xff]
        %v1293 = vld [vmem:[#allocation7 + $0x1d8] sm:$0xff]
        %v1294 = vld [vmem:[#allocation7 + $0x1e0] sm:$0xff]
        %v1295 = vld [vmem:[#allocation7 + $0x1e8] sm:$0xff]
        %v1296 = vld [vmem:[#allocation7 + $0x1f0] sm:$0xff]
        %v1297 = vld [vmem:[#allocation7 + $0x1f8] sm:$0xff]
        %v1298 = vld [vmem:[%s5] sm:$0x3]
        %v1300 = vperm.slane %v1298, 0
        %v1301 = vperm.slane %v1298, 1
        %1304 = vmatpush.msra.mxu0 %v1264
        %1305 = vmatpush.msra.mxu0 %v1262
        %1306 = vmatpush.msra.mxu0 %v1260
        %1307 = vmatpush.msra.mxu0 %v1258
        %1308 = vmatpush.msra.mxu0 %v1256
        %1309 = vmatpush.msra.mxu0 %v1254
        %1310 = vmatpush.msra.mxu0 %v1252
        %1311 = vmatpush.msra.mxu0 %v1250
        %1312 = vmatpush.msra.mxu0 %v1248
        %1313 = vmatpush.msra.mxu0 %v1246
        %1314 = vmatpush.msra.mxu0 %v1244
        %1315 = vmatpush.msra.mxu0 %v1242
        %1316 = vmatpush.msra.mxu0 %v1240
        %1317 = vmatpush.msra.mxu0 %v1238
        %1318 = vmatpush.msra.mxu0 %v1236
        %1319 = vmatpush.msra.mxu0 %v1234
        %1320 = vmatmul.f32.gmra.mxu0 %v1202
        %v1321 = vpop.f32.mrf.mxu0
        %v1322 = vadd.f32 %v1300, %v1321
        %1323 = vmatmul.f32.gmra.mxu0 %v1204
        %v1324 = vpop.f32.mrf.mxu0
        %v1325 = vadd.f32 %v1300, %v1324
        %1326 = vmatmul.f32.gmra.mxu0 %v1206
        %v1327 = vpop.f32.mrf.mxu0
        %v1328 = vadd.f32 %v1300, %v1327
        %1329 = vmatmul.f32.gmra.mxu0 %v1208
        %v1330 = vpop.f32.mrf.mxu0
        %v1331 = vadd.f32 %v1300, %v1330
        %1332 = vmatmul.f32.gmra.mxu0 %v1210
        %v1333 = vpop.f32.mrf.mxu0
        %v1334 = vadd.f32 %v1300, %v1333
        %1335 = vmatmul.f32.gmra.mxu0 %v1212
        %v1336 = vpop.f32.mrf.mxu0
        %v1337 = vadd.f32 %v1300, %v1336
        %1338 = vmatmul.f32.gmra.mxu0 %v1214
        %v1339 = vpop.f32.mrf.mxu0
        %v1340 = vadd.f32 %v1300, %v1339
        %1341 = vmatmul.f32.gmra.mxu0 %v1216
        %v1342 = vpop.f32.mrf.mxu0
        %v1343 = vadd.f32 %v1300, %v1342
        %1344 = vmatmul.f32.gmra.mxu0 %v1218
        %v1345 = vpop.f32.mrf.mxu0
        %v1346 = vadd.f32 %v1300, %v1345
        %1347 = vmatmul.f32.gmra.mxu0 %v1220
        %v1348 = vpop.f32.mrf.mxu0
        %v1349 = vadd.f32 %v1300, %v1348
        %1350 = vmatmul.f32.gmra.mxu0 %v1222
        %v1351 = vpop.f32.mrf.mxu0
        %v1352 = vadd.f32 %v1300, %v1351
        %1353 = vmatmul.f32.gmra.mxu0 %v1224
        %v1354 = vpop.f32.mrf.mxu0
        %v1355 = vadd.f32 %v1300, %v1354
        %1356 = vmatmul.f32.gmra.mxu0 %v1226
        %v1357 = vpop.f32.mrf.mxu0
        %v1358 = vadd.f32 %v1300, %v1357
        %1359 = vmatmul.f32.gmra.mxu0 %v1228
        %v1360 = vpop.f32.mrf.mxu0
        %v1361 = vadd.f32 %v1300, %v1360
        %1362 = vmatmul.f32.gmra.mxu0 %v1230
        %v1363 = vpop.f32.mrf.mxu0
        %v1364 = vadd.f32 %v1300, %v1363
        %1365 = vmatmul.f32.gmra.mxu0 %v1232
        %v1366 = vpop.f32.mrf.mxu0
        %v1367 = vadd.f32 %v1300, %v1366
        %1368 = vdwg.mxu0
        %1369 = vmatpush.msra.mxu0 %v1296
        %1370 = vmatpush.msra.mxu0 %v1294
        %1371 = vmatpush.msra.mxu0 %v1292
        %1372 = vmatpush.msra.mxu0 %v1290
        %1373 = vmatpush.msra.mxu0 %v1288
        %1374 = vmatpush.msra.mxu0 %v1286
        %1375 = vmatpush.msra.mxu0 %v1284
        %1376 = vmatpush.msra.mxu0 %v1282
        %1377 = vmatpush.msra.mxu0 %v1280
        %1378 = vmatpush.msra.mxu0 %v1278
        %1379 = vmatpush.msra.mxu0 %v1276
        %1380 = vmatpush.msra.mxu0 %v1274
        %1381 = vmatpush.msra.mxu0 %v1272
        %1382 = vmatpush.msra.mxu0 %v1270
        %1383 = vmatpush.msra.mxu0 %v1268
        %1384 = vmatpush.msra.mxu0 %v1266
        %1385 = vmatmul.f32.gmra.mxu0 %v1203
        %v1386 = vpop.f32.mrf.mxu0
        %v1387 = vadd.f32 %v1322, %v1386
        %1388 = vmatmul.f32.gmra.mxu0 %v1205
        %v1389 = vpop.f32.mrf.mxu0
        %v1390 = vadd.f32 %v1325, %v1389
        %1391 = vmatmul.f32.gmra.mxu0 %v1207
        %v1392 = vpop.f32.mrf.mxu0
        %v1393 = vadd.f32 %v1328, %v1392
        %1394 = vmatmul.f32.gmra.mxu0 %v1209
        %v1395 = vpop.f32.mrf.mxu0
        %v1396 = vadd.f32 %v1331, %v1395
        %1397 = vmatmul.f32.gmra.mxu0 %v1211
        %v1398 = vpop.f32.mrf.mxu0
        %v1399 = vadd.f32 %v1334, %v1398
        %1400 = vmatmul.f32.gmra.mxu0 %v1213
        %v1401 = vpop.f32.mrf.mxu0
        %v1402 = vadd.f32 %v1337, %v1401
        %1403 = vmatmul.f32.gmra.mxu0 %v1215
        %v1404 = vpop.f32.mrf.mxu0
        %v1405 = vadd.f32 %v1340, %v1404
        %1406 = vmatmul.f32.gmra.mxu0 %v1217
        %v1407 = vpop.f32.mrf.mxu0
        %v1408 = vadd.f32 %v1343, %v1407
        %1409 = vmatmul.f32.gmra.mxu0 %v1219
        %v1410 = vpop.f32.mrf.mxu0
        %v1411 = vadd.f32 %v1346, %v1410
        %1412 = vmatmul.f32.gmra.mxu0 %v1221
        %v1413 = vpop.f32.mrf.mxu0
        %v1414 = vadd.f32 %v1349, %v1413
        %1415 = vmatmul.f32.gmra.mxu0 %v1223
        %v1416 = vpop.f32.mrf.mxu0
        %v1417 = vadd.f32 %v1352, %v1416
        %1418 = vmatmul.f32.gmra.mxu0 %v1225
        %v1419 = vpop.f32.mrf.mxu0
        %v1420 = vadd.f32 %v1355, %v1419
        %1421 = vmatmul.f32.gmra.mxu0 %v1227
        %v1422 = vpop.f32.mrf.mxu0
        %v1423 = vadd.f32 %v1358, %v1422
        %1424 = vmatmul.f32.gmra.mxu0 %v1229
        %v1425 = vpop.f32.mrf.mxu0
        %v1426 = vadd.f32 %v1361, %v1425
        %1427 = vmatmul.f32.gmra.mxu0 %v1231
        %v1428 = vpop.f32.mrf.mxu0
        %v1429 = vadd.f32 %v1364, %v1428
        %1430 = vmatmul.f32.gmra.mxu0 %v1233
        %v1431 = vpop.f32.mrf.mxu0
        %v1432 = vadd.f32 %v1367, %v1431
        %1433 = vdwg.mxu0
        %1434 = vmatpush.msra.mxu0 %v1265
        %1435 = vmatpush.msra.mxu0 %v1263
        %1436 = vmatpush.msra.mxu0 %v1261
        %1437 = vmatpush.msra.mxu0 %v1259
        %1438 = vmatpush.msra.mxu0 %v1257
        %1439 = vmatpush.msra.mxu0 %v1255
        %1440 = vmatpush.msra.mxu0 %v1253
        %1441 = vmatpush.msra.mxu0 %v1251
        %1442 = vmatpush.msra.mxu0 %v1249
        %1443 = vmatpush.msra.mxu0 %v1247
        %1444 = vmatpush.msra.mxu0 %v1245
        %1445 = vmatpush.msra.mxu0 %v1243
        %1446 = vmatpush.msra.mxu0 %v1241
        %1447 = vmatpush.msra.mxu0 %v1239
        %1448 = vmatpush.msra.mxu0 %v1237
        %1449 = vmatpush.msra.mxu0 %v1235
        %1450 = vmatmul.f32.gmra.mxu0 %v1202
        %v1451 = vpop.f32.mrf.mxu0
        %v1452 = vadd.f32 %v1301, %v1451
        %1453 = vmatmul.f32.gmra.mxu0 %v1204
        %v1454 = vpop.f32.mrf.mxu0
        %v1455 = vadd.f32 %v1301, %v1454
        %1456 = vmatmul.f32.gmra.mxu0 %v1206
        %v1457 = vpop.f32.mrf.mxu0
        %v1458 = vadd.f32 %v1301, %v1457
        %1459 = vmatmul.f32.gmra.mxu0 %v1208
        %v1460 = vpop.f32.mrf.mxu0
        %v1461 = vadd.f32 %v1301, %v1460
        %1462 = vmatmul.f32.gmra.mxu0 %v1210
        %v1463 = vpop.f32.mrf.mxu0
        %v1464 = vadd.f32 %v1301, %v1463
        %1465 = vmatmul.f32.gmra.mxu0 %v1212
        %v1466 = vpop.f32.mrf.mxu0
        %v1467 = vadd.f32 %v1301, %v1466
        %1468 = vmatmul.f32.gmra.mxu0 %v1214
        %v1469 = vpop.f32.mrf.mxu0
        %v1470 = vadd.f32 %v1301, %v1469
        %1471 = vmatmul.f32.gmra.mxu0 %v1216
        %v1472 = vpop.f32.mrf.mxu0
        %v1473 = vadd.f32 %v1301, %v1472
        %1474 = vmatmul.f32.gmra.mxu0 %v1218
        %v1475 = vpop.f32.mrf.mxu0
        %v1476 = vadd.f32 %v1301, %v1475
        %1477 = vmatmul.f32.gmra.mxu0 %v1220
        %v1478 = vpop.f32.mrf.mxu0
        %v1479 = vadd.f32 %v1301, %v1478
        %1480 = vmatmul.f32.gmra.mxu0 %v1222
        %v1481 = vpop.f32.mrf.mxu0
        %v1482 = vadd.f32 %v1301, %v1481
        %1483 = vmatmul.f32.gmra.mxu0 %v1224
        %v1484 = vpop.f32.mrf.mxu0
        %v1485 = vadd.f32 %v1301, %v1484
        %1486 = vmatmul.f32.gmra.mxu0 %v1226
        %v1487 = vpop.f32.mrf.mxu0
        %v1488 = vadd.f32 %v1301, %v1487
        %1489 = vmatmul.f32.gmra.mxu0 %v1228
        %v1490 = vpop.f32.mrf.mxu0
        %v1491 = vadd.f32 %v1301, %v1490
        %1492 = vmatmul.f32.gmra.mxu0 %v1230
        %v1493 = vpop.f32.mrf.mxu0
        %v1494 = vadd.f32 %v1301, %v1493
        %1495 = vmatmul.f32.gmra.mxu0 %v1232
        %v1496 = vpop.f32.mrf.mxu0
        %v1497 = vadd.f32 %v1301, %v1496
        %1498 = vdwg.mxu0
        %1499 = vmatpush.msra.mxu0 %v1297
        %1500 = vmatpush.msra.mxu0 %v1295
        %1501 = vmatpush.msra.mxu0 %v1293
        %1502 = vmatpush.msra.mxu0 %v1291
        %1503 = vmatpush.msra.mxu0 %v1289
        %1504 = vmatpush.msra.mxu0 %v1287
        %1505 = vmatpush.msra.mxu0 %v1285
        %1506 = vmatpush.msra.mxu0 %v1283
        %1507 = vmatpush.msra.mxu0 %v1281
        %1508 = vmatpush.msra.mxu0 %v1279
        %1509 = vmatpush.msra.mxu0 %v1277
        %1510 = vmatpush.msra.mxu0 %v1275
        %1511 = vmatpush.msra.mxu0 %v1273
        %1512 = vmatpush.msra.mxu0 %v1271
        %1513 = vmatpush.msra.mxu0 %v1269
        %1514 = vmatpush.msra.mxu0 %v1267
        %1515 = vmatmul.f32.gmra.mxu0 %v1203
        %v1516 = vpop.f32.mrf.mxu0
        %v1517 = vadd.f32 %v1452, %v1516
        %1518 = vmatmul.f32.gmra.mxu0 %v1205
        %v1519 = vpop.f32.mrf.mxu0
        %v1520 = vadd.f32 %v1455, %v1519
        %1521 = vmatmul.f32.gmra.mxu0 %v1207
        %v1522 = vpop.f32.mrf.mxu0
        %v1523 = vadd.f32 %v1458, %v1522
        %1524 = vmatmul.f32.gmra.mxu0 %v1209
        %v1525 = vpop.f32.mrf.mxu0
        %v1526 = vadd.f32 %v1461, %v1525
        %1527 = vmatmul.f32.gmra.mxu0 %v1211
        %v1528 = vpop.f32.mrf.mxu0
        %v1529 = vadd.f32 %v1464, %v1528
        %1530 = vmatmul.f32.gmra.mxu0 %v1213
        %v1531 = vpop.f32.mrf.mxu0
        %v1532 = vadd.f32 %v1467, %v1531
        %1533 = vmatmul.f32.gmra.mxu0 %v1215
        %v1534 = vpop.f32.mrf.mxu0
        %v1535 = vadd.f32 %v1470, %v1534
        %1536 = vmatmul.f32.gmra.mxu0 %v1217
        %v1537 = vpop.f32.mrf.mxu0
        %v1538 = vadd.f32 %v1473, %v1537
        %1539 = vmatmul.f32.gmra.mxu0 %v1219
        %v1540 = vpop.f32.mrf.mxu0
        %v1541 = vadd.f32 %v1476, %v1540
        %1542 = vmatmul.f32.gmra.mxu0 %v1221
        %v1543 = vpop.f32.mrf.mxu0
        %v1544 = vadd.f32 %v1479, %v1543
        %1545 = vmatmul.f32.gmra.mxu0 %v1223
        %v1546 = vpop.f32.mrf.mxu0
        %v1547 = vadd.f32 %v1482, %v1546
        %1548 = vmatmul.f32.gmra.mxu0 %v1225
        %v1549 = vpop.f32.mrf.mxu0
        %v1550 = vadd.f32 %v1485, %v1549
        %1551 = vmatmul.f32.gmra.mxu0 %v1227
        %v1552 = vpop.f32.mrf.mxu0
        %v1553 = vadd.f32 %v1488, %v1552
        %1554 = vmatmul.f32.gmra.mxu0 %v1229
        %v1555 = vpop.f32.mrf.mxu0
        %v1556 = vadd.f32 %v1491, %v1555
        %1557 = vmatmul.f32.gmra.mxu0 %v1231
        %v1558 = vpop.f32.mrf.mxu0
        %v1559 = vadd.f32 %v1494, %v1558
        %1560 = vmatmul.f32.gmra.mxu0 %v1233
        %v1561 = vpop.f32.mrf.mxu0
        %v1562 = vadd.f32 %v1497, %v1561
        %1563 = vdwg.mxu0
        %vm1564 = vcmp.gt.f32.partialorder %v1387, 20.0
        %vm1565 = vcmp.gt.f32.partialorder %v1517, 20.0
        %vm1566 = vcmp.gt.f32.partialorder %v1390, 20.0
        %vm1567 = vcmp.gt.f32.partialorder %v1520, 20.0
        %vm1568 = vcmp.gt.f32.partialorder %v1393, 20.0
        %vm1569 = vcmp.gt.f32.partialorder %v1523, 20.0
        %vm1570 = vcmp.gt.f32.partialorder %v1396, 20.0
        %vm1571 = vcmp.gt.f32.partialorder %v1526, 20.0
        %vm1572 = vcmp.gt.f32.partialorder %v1399, 20.0
        %vm1573 = vcmp.gt.f32.partialorder %v1529, 20.0
        %vm1574 = vcmp.gt.f32.partialorder %v1402, 20.0
        %vm1575 = vcmp.gt.f32.partialorder %v1532, 20.0
        %vm1576 = vcmp.gt.f32.partialorder %v1405, 20.0
        %vm1577 = vcmp.gt.f32.partialorder %v1535, 20.0
        %vm1578 = vcmp.gt.f32.partialorder %v1408, 20.0
        %vm1579 = vcmp.gt.f32.partialorder %v1538, 20.0
        %vm1580 = vcmp.gt.f32.partialorder %v1411, 20.0
        %vm1581 = vcmp.gt.f32.partialorder %v1541, 20.0
        %vm1582 = vcmp.gt.f32.partialorder %v1414, 20.0
        %vm1583 = vcmp.gt.f32.partialorder %v1544, 20.0
        %vm1584 = vcmp.gt.f32.partialorder %v1417, 20.0
        %vm1585 = vcmp.gt.f32.partialorder %v1547, 20.0
        %vm1586 = vcmp.gt.f32.partialorder %v1420, 20.0
        %vm1587 = vcmp.gt.f32.partialorder %v1550, 20.0
        %vm1588 = vcmp.gt.f32.partialorder %v1423, 20.0
        %vm1589 = vcmp.gt.f32.partialorder %v1553, 20.0
        %vm1590 = vcmp.gt.f32.partialorder %v1426, 20.0
        %vm1591 = vcmp.gt.f32.partialorder %v1556, 20.0
        %vm1592 = vcmp.gt.f32.partialorder %v1429, 20.0
        %vm1593 = vcmp.gt.f32.partialorder %v1559, 20.0
        %vm1594 = vcmp.gt.f32.partialorder %v1432, 20.0
        %vm1595 = vcmp.gt.f32.partialorder %v1562, 20.0
        %v1596 = vmul.f32 %v1387, 1.442695
        %v1597 = vpow.pop %v1596
        %v1598 = vmul.f32 %v1517, 1.442695
        %v1599 = vpow.pop %v1598
        %v1600 = vmul.f32 %v1390, 1.442695
        %v1601 = vpow.pop %v1600
        %v1602 = vmul.f32 %v1520, 1.442695
        %v1603 = vpow.pop %v1602
        %v1604 = vmul.f32 %v1393, 1.442695
        %v1605 = vpow.pop %v1604
        %v1606 = vmul.f32 %v1523, 1.442695
        %v1607 = vpow.pop %v1606
        %v1608 = vmul.f32 %v1396, 1.442695
        %v1609 = vpow.pop %v1608
        %v1610 = vmul.f32 %v1526, 1.442695
        %v1611 = vpow.pop %v1610
        %v1612 = vmul.f32 %v1399, 1.442695
        %v1613 = vpow.pop %v1612
        %v1614 = vmul.f32 %v1529, 1.442695
        %v1615 = vpow.pop %v1614
        %v1616 = vmul.f32 %v1402, 1.442695
        %v1617 = vpow.pop %v1616
        %v1618 = vmul.f32 %v1532, 1.442695
        %v1619 = vpow.pop %v1618
        %v1620 = vmul.f32 %v1405, 1.442695
        %v1621 = vpow.pop %v1620
        %v1622 = vmul.f32 %v1535, 1.442695
        %v1623 = vpow.pop %v1622
        %v1624 = vmul.f32 %v1408, 1.442695
        %v1625 = vpow.pop %v1624
        %v1626 = vmul.f32 %v1538, 1.442695
        %v1627 = vpow.pop %v1626
        %v1628 = vmul.f32 %v1411, 1.442695
        %v1629 = vpow.pop %v1628
        %v1630 = vmul.f32 %v1541, 1.442695
        %v1631 = vpow.pop %v1630
        %v1632 = vmul.f32 %v1414, 1.442695
        %v1633 = vpow.pop %v1632
        %v1634 = vmul.f32 %v1544, 1.442695
        %v1635 = vpow.pop %v1634
        %v1636 = vmul.f32 %v1417, 1.442695
        %v1637 = vpow.pop %v1636
        %v1638 = vmul.f32 %v1547, 1.442695
        %v1639 = vpow.pop %v1638
        %v1640 = vmul.f32 %v1420, 1.442695
        %v1641 = vpow.pop %v1640
        %v1642 = vmul.f32 %v1550, 1.442695
        %v1643 = vpow.pop %v1642
        %v1644 = vmul.f32 %v1423, 1.442695
        %v1645 = vpow.pop %v1644
        %v1646 = vmul.f32 %v1553, 1.442695
        %v1647 = vpow.pop %v1646
        %v1648 = vmul.f32 %v1426, 1.442695
        %v1649 = vpow.pop %v1648
        %v1650 = vmul.f32 %v1556, 1.442695
        %v1651 = vpow.pop %v1650
        %v1652 = vmul.f32 %v1429, 1.442695
        %v1653 = vpow.pop %v1652
        %v1654 = vmul.f32 %v1559, 1.442695
        %v1655 = vpow.pop %v1654
        %v1656 = vmul.f32 %v1432, 1.442695
        %v1657 = vpow.pop %v1656
        %v1658 = vmul.f32 %v1562, 1.442695
        %v1659 = vpow.pop %v1658
        %v1660 = vadd.f32 %v1597, 1.0
        %v1661 = vlog2.pop %v1660
        %v1662 = vmul.f32 %v1661, 0.6931472
        %v1663 = vmul.f32 -0.5, %v1597
        %v1664 = vadd.f32 %v1663, 1.0
        %v1665 = vmul.f32 %v1664, %v1597
        %v1666 = vand.u32 2147483647, %v1597
        %vm1667 = vcmp.lt.f32.partialorder %v1666, 0.0004427343
        %v1668 = vsel %vm1667, %v1665, %v1662
        %v1669 = vadd.f32 %v1599, 1.0
        %v1670 = vlog2.pop %v1669
        %v1671 = vmul.f32 %v1670, 0.6931472
        %v1672 = vmul.f32 -0.5, %v1599
        %v1673 = vadd.f32 %v1672, 1.0
        %v1674 = vmul.f32 %v1673, %v1599
        %v1675 = vand.u32 2147483647, %v1599
        %vm1676 = vcmp.lt.f32.partialorder %v1675, 0.0004427343
        %v1677 = vsel %vm1676, %v1674, %v1671
        %v1678 = vadd.f32 %v1601, 1.0
        %v1679 = vlog2.pop %v1678
        %v1680 = vmul.f32 %v1679, 0.6931472
        %v1681 = vmul.f32 -0.5, %v1601
        %v1682 = vadd.f32 %v1681, 1.0
        %v1683 = vmul.f32 %v1682, %v1601
        %v1684 = vand.u32 2147483647, %v1601
        %vm1685 = vcmp.lt.f32.partialorder %v1684, 0.0004427343
        %v1686 = vsel %vm1685, %v1683, %v1680
        %v1687 = vadd.f32 %v1603, 1.0
        %v1688 = vlog2.pop %v1687
        %v1689 = vmul.f32 %v1688, 0.6931472
        %v1690 = vmul.f32 -0.5, %v1603
        %v1691 = vadd.f32 %v1690, 1.0
        %v1692 = vmul.f32 %v1691, %v1603
        %v1693 = vand.u32 2147483647, %v1603
        %vm1694 = vcmp.lt.f32.partialorder %v1693, 0.0004427343
        %v1695 = vsel %vm1694, %v1692, %v1689
        %v1696 = vadd.f32 %v1605, 1.0
        %v1697 = vlog2.pop %v1696
        %v1698 = vmul.f32 %v1697, 0.6931472
        %v1699 = vmul.f32 -0.5, %v1605
        %v1700 = vadd.f32 %v1699, 1.0
        %v1701 = vmul.f32 %v1700, %v1605
        %v1702 = vand.u32 2147483647, %v1605
        %vm1703 = vcmp.lt.f32.partialorder %v1702, 0.0004427343
        %v1704 = vsel %vm1703, %v1701, %v1698
        %v1705 = vadd.f32 %v1607, 1.0
        %v1706 = vlog2.pop %v1705
        %v1707 = vmul.f32 %v1706, 0.6931472
        %v1708 = vmul.f32 -0.5, %v1607
        %v1709 = vadd.f32 %v1708, 1.0
        %v1710 = vmul.f32 %v1709, %v1607
        %v1711 = vand.u32 2147483647, %v1607
        %vm1712 = vcmp.lt.f32.partialorder %v1711, 0.0004427343
        %v1713 = vsel %vm1712, %v1710, %v1707
        %v1714 = vadd.f32 %v1609, 1.0
        %v1715 = vlog2.pop %v1714
        %v1716 = vmul.f32 %v1715, 0.6931472
        %v1717 = vmul.f32 -0.5, %v1609
        %v1718 = vadd.f32 %v1717, 1.0
        %v1719 = vmul.f32 %v1718, %v1609
        %v1720 = vand.u32 2147483647, %v1609
        %vm1721 = vcmp.lt.f32.partialorder %v1720, 0.0004427343
        %v1722 = vsel %vm1721, %v1719, %v1716
        %v1723 = vadd.f32 %v1611, 1.0
        %v1724 = vlog2.pop %v1723
        %v1725 = vmul.f32 %v1724, 0.6931472
        %v1726 = vmul.f32 -0.5, %v1611
        %v1727 = vadd.f32 %v1726, 1.0
        %v1728 = vmul.f32 %v1727, %v1611
        %v1729 = vand.u32 2147483647, %v1611
        %vm1730 = vcmp.lt.f32.partialorder %v1729, 0.0004427343
        %v1731 = vsel %vm1730, %v1728, %v1725
        %v1732 = vadd.f32 %v1613, 1.0
        %v1733 = vlog2.pop %v1732
        %v1734 = vmul.f32 %v1733, 0.6931472
        %v1735 = vmul.f32 -0.5, %v1613
        %v1736 = vadd.f32 %v1735, 1.0
        %v1737 = vmul.f32 %v1736, %v1613
        %v1738 = vand.u32 2147483647, %v1613
        %vm1739 = vcmp.lt.f32.partialorder %v1738, 0.0004427343
        %v1740 = vsel %vm1739, %v1737, %v1734
        %v1741 = vadd.f32 %v1615, 1.0
        %v1742 = vlog2.pop %v1741
        %v1743 = vmul.f32 %v1742, 0.6931472
        %v1744 = vmul.f32 -0.5, %v1615
        %v1745 = vadd.f32 %v1744, 1.0
        %v1746 = vmul.f32 %v1745, %v1615
        %v1747 = vand.u32 2147483647, %v1615
        %vm1748 = vcmp.lt.f32.partialorder %v1747, 0.0004427343
        %v1749 = vsel %vm1748, %v1746, %v1743
        %v1750 = vadd.f32 %v1617, 1.0
        %v1751 = vlog2.pop %v1750
        %v1752 = vmul.f32 %v1751, 0.6931472
        %v1753 = vmul.f32 -0.5, %v1617
        %v1754 = vadd.f32 %v1753, 1.0
        %v1755 = vmul.f32 %v1754, %v1617
        %v1756 = vand.u32 2147483647, %v1617
        %vm1757 = vcmp.lt.f32.partialorder %v1756, 0.0004427343
        %v1758 = vsel %vm1757, %v1755, %v1752
        %v1759 = vadd.f32 %v1619, 1.0
        %v1760 = vlog2.pop %v1759
        %v1761 = vmul.f32 %v1760, 0.6931472
        %v1762 = vmul.f32 -0.5, %v1619
        %v1763 = vadd.f32 %v1762, 1.0
        %v1764 = vmul.f32 %v1763, %v1619
        %v1765 = vand.u32 2147483647, %v1619
        %vm1766 = vcmp.lt.f32.partialorder %v1765, 0.0004427343
        %v1767 = vsel %vm1766, %v1764, %v1761
        %v1768 = vadd.f32 %v1621, 1.0
        %v1769 = vlog2.pop %v1768
        %v1770 = vmul.f32 %v1769, 0.6931472
        %v1771 = vmul.f32 -0.5, %v1621
        %v1772 = vadd.f32 %v1771, 1.0
        %v1773 = vmul.f32 %v1772, %v1621
        %v1774 = vand.u32 2147483647, %v1621
        %vm1775 = vcmp.lt.f32.partialorder %v1774, 0.0004427343
        %v1776 = vsel %vm1775, %v1773, %v1770
        %v1777 = vadd.f32 %v1623, 1.0
        %v1778 = vlog2.pop %v1777
        %v1779 = vmul.f32 %v1778, 0.6931472
        %v1780 = vmul.f32 -0.5, %v1623
        %v1781 = vadd.f32 %v1780, 1.0
        %v1782 = vmul.f32 %v1781, %v1623
        %v1783 = vand.u32 2147483647, %v1623
        %vm1784 = vcmp.lt.f32.partialorder %v1783, 0.0004427343
        %v1785 = vsel %vm1784, %v1782, %v1779
        %v1786 = vadd.f32 %v1625, 1.0
        %v1787 = vlog2.pop %v1786
        %v1788 = vmul.f32 %v1787, 0.6931472
        %v1789 = vmul.f32 -0.5, %v1625
        %v1790 = vadd.f32 %v1789, 1.0
        %v1791 = vmul.f32 %v1790, %v1625
        %v1792 = vand.u32 2147483647, %v1625
        %vm1793 = vcmp.lt.f32.partialorder %v1792, 0.0004427343
        %v1794 = vsel %vm1793, %v1791, %v1788
        %v1795 = vadd.f32 %v1627, 1.0
        %v1796 = vlog2.pop %v1795
        %v1797 = vmul.f32 %v1796, 0.6931472
        %v1798 = vmul.f32 -0.5, %v1627
        %v1799 = vadd.f32 %v1798, 1.0
        %v1800 = vmul.f32 %v1799, %v1627
        %v1801 = vand.u32 2147483647, %v1627
        %vm1802 = vcmp.lt.f32.partialorder %v1801, 0.0004427343
        %v1803 = vsel %vm1802, %v1800, %v1797
        %v1804 = vadd.f32 %v1629, 1.0
        %v1805 = vlog2.pop %v1804
        %v1806 = vmul.f32 %v1805, 0.6931472
        %v1807 = vmul.f32 -0.5, %v1629
        %v1808 = vadd.f32 %v1807, 1.0
        %v1809 = vmul.f32 %v1808, %v1629
        %v1810 = vand.u32 2147483647, %v1629
        %vm1811 = vcmp.lt.f32.partialorder %v1810, 0.0004427343
        %v1812 = vsel %vm1811, %v1809, %v1806
        %v1813 = vadd.f32 %v1631, 1.0
        %v1814 = vlog2.pop %v1813
        %v1815 = vmul.f32 %v1814, 0.6931472
        %v1816 = vmul.f32 -0.5, %v1631
        %v1817 = vadd.f32 %v1816, 1.0
        %v1818 = vmul.f32 %v1817, %v1631
        %v1819 = vand.u32 2147483647, %v1631
        %vm1820 = vcmp.lt.f32.partialorder %v1819, 0.0004427343
        %v1821 = vsel %vm1820, %v1818, %v1815
        %v1822 = vadd.f32 %v1633, 1.0
        %v1823 = vlog2.pop %v1822
        %v1824 = vmul.f32 %v1823, 0.6931472
        %v1825 = vmul.f32 -0.5, %v1633
        %v1826 = vadd.f32 %v1825, 1.0
        %v1827 = vmul.f32 %v1826, %v1633
        %v1828 = vand.u32 2147483647, %v1633
        %vm1829 = vcmp.lt.f32.partialorder %v1828, 0.0004427343
        %v1830 = vsel %vm1829, %v1827, %v1824
        %v1831 = vadd.f32 %v1635, 1.0
        %v1832 = vlog2.pop %v1831
        %v1833 = vmul.f32 %v1832, 0.6931472
        %v1834 = vmul.f32 -0.5, %v1635
        %v1835 = vadd.f32 %v1834, 1.0
        %v1836 = vmul.f32 %v1835, %v1635
        %v1837 = vand.u32 2147483647, %v1635
        %vm1838 = vcmp.lt.f32.partialorder %v1837, 0.0004427343
        %v1839 = vsel %vm1838, %v1836, %v1833
        %v1840 = vadd.f32 %v1637, 1.0
        %v1841 = vlog2.pop %v1840
        %v1842 = vmul.f32 %v1841, 0.6931472
        %v1843 = vmul.f32 -0.5, %v1637
        %v1844 = vadd.f32 %v1843, 1.0
        %v1845 = vmul.f32 %v1844, %v1637
        %v1846 = vand.u32 2147483647, %v1637
        %vm1847 = vcmp.lt.f32.partialorder %v1846, 0.0004427343
        %v1848 = vsel %vm1847, %v1845, %v1842
        %v1849 = vadd.f32 %v1639, 1.0
        %v1850 = vlog2.pop %v1849
        %v1851 = vmul.f32 %v1850, 0.6931472
        %v1852 = vmul.f32 -0.5, %v1639
        %v1853 = vadd.f32 %v1852, 1.0
        %v1854 = vmul.f32 %v1853, %v1639
        %v1855 = vand.u32 2147483647, %v1639
        %vm1856 = vcmp.lt.f32.partialorder %v1855, 0.0004427343
        %v1857 = vsel %vm1856, %v1854, %v1851
        %v1858 = vadd.f32 %v1641, 1.0
        %v1859 = vlog2.pop %v1858
        %v1860 = vmul.f32 %v1859, 0.6931472
        %v1861 = vmul.f32 -0.5, %v1641
        %v1862 = vadd.f32 %v1861, 1.0
        %v1863 = vmul.f32 %v1862, %v1641
        %v1864 = vand.u32 2147483647, %v1641
        %vm1865 = vcmp.lt.f32.partialorder %v1864, 0.0004427343
        %v1866 = vsel %vm1865, %v1863, %v1860
        %v1867 = vadd.f32 %v1643, 1.0
        %v1868 = vlog2.pop %v1867
        %v1869 = vmul.f32 %v1868, 0.6931472
        %v1870 = vmul.f32 -0.5, %v1643
        %v1871 = vadd.f32 %v1870, 1.0
        %v1872 = vmul.f32 %v1871, %v1643
        %v1873 = vand.u32 2147483647, %v1643
        %vm1874 = vcmp.lt.f32.partialorder %v1873, 0.0004427343
        %v1875 = vsel %vm1874, %v1872, %v1869
        %v1876 = vadd.f32 %v1645, 1.0
        %v1877 = vlog2.pop %v1876
        %v1878 = vmul.f32 %v1877, 0.6931472
        %v1879 = vmul.f32 -0.5, %v1645
        %v1880 = vadd.f32 %v1879, 1.0
        %v1881 = vmul.f32 %v1880, %v1645
        %v1882 = vand.u32 2147483647, %v1645
        %vm1883 = vcmp.lt.f32.partialorder %v1882, 0.0004427343
        %v1884 = vsel %vm1883, %v1881, %v1878
        %v1885 = vadd.f32 %v1647, 1.0
        %v1886 = vlog2.pop %v1885
        %v1887 = vmul.f32 %v1886, 0.6931472
        %v1888 = vmul.f32 -0.5, %v1647
        %v1889 = vadd.f32 %v1888, 1.0
        %v1890 = vmul.f32 %v1889, %v1647
        %v1891 = vand.u32 2147483647, %v1647
        %vm1892 = vcmp.lt.f32.partialorder %v1891, 0.0004427343
        %v1893 = vsel %vm1892, %v1890, %v1887
        %v1894 = vadd.f32 %v1649, 1.0
        %v1895 = vlog2.pop %v1894
        %v1896 = vmul.f32 %v1895, 0.6931472
        %v1897 = vmul.f32 -0.5, %v1649
        %v1898 = vadd.f32 %v1897, 1.0
        %v1899 = vmul.f32 %v1898, %v1649
        %v1900 = vand.u32 2147483647, %v1649
        %vm1901 = vcmp.lt.f32.partialorder %v1900, 0.0004427343
        %v1902 = vsel %vm1901, %v1899, %v1896
        %v1903 = vadd.f32 %v1651, 1.0
        %v1904 = vlog2.pop %v1903
        %v1905 = vmul.f32 %v1904, 0.6931472
        %v1906 = vmul.f32 -0.5, %v1651
        %v1907 = vadd.f32 %v1906, 1.0
        %v1908 = vmul.f32 %v1907, %v1651
        %v1909 = vand.u32 2147483647, %v1651
        %vm1910 = vcmp.lt.f32.partialorder %v1909, 0.0004427343
        %v1911 = vsel %vm1910, %v1908, %v1905
        %v1912 = vadd.f32 %v1653, 1.0
        %v1913 = vlog2.pop %v1912
        %v1914 = vmul.f32 %v1913, 0.6931472
        %v1915 = vmul.f32 -0.5, %v1653
        %v1916 = vadd.f32 %v1915, 1.0
        %v1917 = vmul.f32 %v1916, %v1653
        %v1918 = vand.u32 2147483647, %v1653
        %vm1919 = vcmp.lt.f32.partialorder %v1918, 0.0004427343
        %v1920 = vsel %vm1919, %v1917, %v1914
        %v1921 = vadd.f32 %v1655, 1.0
        %v1922 = vlog2.pop %v1921
        %v1923 = vmul.f32 %v1922, 0.6931472
        %v1924 = vmul.f32 -0.5, %v1655
        %v1925 = vadd.f32 %v1924, 1.0
        %v1926 = vmul.f32 %v1925, %v1655
        %v1927 = vand.u32 2147483647, %v1655
        %vm1928 = vcmp.lt.f32.partialorder %v1927, 0.0004427343
        %v1929 = vsel %vm1928, %v1926, %v1923
        %v1930 = vadd.f32 %v1657, 1.0
        %v1931 = vlog2.pop %v1930
        %v1932 = vmul.f32 %v1931, 0.6931472
        %v1933 = vmul.f32 -0.5, %v1657
        %v1934 = vadd.f32 %v1933, 1.0
        %v1935 = vmul.f32 %v1934, %v1657
        %v1936 = vand.u32 2147483647, %v1657
        %vm1937 = vcmp.lt.f32.partialorder %v1936, 0.0004427343
        %v1938 = vsel %vm1937, %v1935, %v1932
        %v1939 = vadd.f32 %v1659, 1.0
        %v1940 = vlog2.pop %v1939
        %v1941 = vmul.f32 %v1940, 0.6931472
        %v1942 = vmul.f32 -0.5, %v1659
        %v1943 = vadd.f32 %v1942, 1.0
        %v1944 = vmul.f32 %v1943, %v1659
        %v1945 = vand.u32 2147483647, %v1659
        %vm1946 = vcmp.lt.f32.partialorder %v1945, 0.0004427343
        %v1947 = vsel %vm1946, %v1944, %v1941
        %v1948 = vsel %vm1564, %v1387, %v1668
        %v1949 = vsel %vm1565, %v1517, %v1677
        %v1950 = vsel %vm1566, %v1390, %v1686
        %v1951 = vsel %vm1567, %v1520, %v1695
        %v1952 = vsel %vm1568, %v1393, %v1704
        %v1953 = vsel %vm1569, %v1523, %v1713
        %v1954 = vsel %vm1570, %v1396, %v1722
        %v1955 = vsel %vm1571, %v1526, %v1731
        %v1956 = vsel %vm1572, %v1399, %v1740
        %v1957 = vsel %vm1573, %v1529, %v1749
        %v1958 = vsel %vm1574, %v1402, %v1758
        %v1959 = vsel %vm1575, %v1532, %v1767
        %v1960 = vsel %vm1576, %v1405, %v1776
        %v1961 = vsel %vm1577, %v1535, %v1785
        %v1962 = vsel %vm1578, %v1408, %v1794
        %v1963 = vsel %vm1579, %v1538, %v1803
        %v1964 = vsel %vm1580, %v1411, %v1812
        %v1965 = vsel %vm1581, %v1541, %v1821
        %v1966 = vsel %vm1582, %v1414, %v1830
        %v1967 = vsel %vm1583, %v1544, %v1839
        %v1968 = vsel %vm1584, %v1417, %v1848
        %v1969 = vsel %vm1585, %v1547, %v1857
        %v1970 = vsel %vm1586, %v1420, %v1866
        %v1971 = vsel %vm1587, %v1550, %v1875
        %v1972 = vsel %vm1588, %v1423, %v1884
        %v1973 = vsel %vm1589, %v1553, %v1893
        %v1974 = vsel %vm1590, %v1426, %v1902
        %v1975 = vsel %vm1591, %v1556, %v1911
        %v1976 = vsel %vm1592, %v1429, %v1920
        %v1977 = vsel %vm1593, %v1559, %v1929
        %v1978 = vsel %vm1594, %v1432, %v1938
        %v1979 = vsel %vm1595, %v1562, %v1947
        %v1980 = vld [vmem:[#allocation9] sm:$0xff]
        %v1981 = vld [vmem:[#allocation9 + $0x8] sm:$0xff]
        %v1982 = vld [vmem:[#allocation9 + $0x10] sm:$0xff]
        %v1983 = vld [vmem:[#allocation9 + $0x18] sm:$0xff]
        %v1984 = vld [vmem:[#allocation9 + $0x20] sm:$0xff]
        %v1985 = vld [vmem:[#allocation9 + $0x28] sm:$0xff]
        %v1986 = vld [vmem:[#allocation9 + $0x30] sm:$0xff]
        %v1987 = vld [vmem:[#allocation9 + $0x38] sm:$0xff]
        %v1988 = vld [vmem:[#allocation9 + $0x40] sm:$0xff]
        %v1989 = vld [vmem:[#allocation9 + $0x48] sm:$0xff]
        %v1990 = vld [vmem:[#allocation9 + $0x50] sm:$0xff]
        %v1991 = vld [vmem:[#allocation9 + $0x58] sm:$0xff]
        %v1992 = vld [vmem:[#allocation9 + $0x60] sm:$0xff]
        %v1993 = vld [vmem:[#allocation9 + $0x68] sm:$0xff]
        %v1994 = vld [vmem:[#allocation9 + $0x70] sm:$0xff]
        %v1995 = vld [vmem:[#allocation9 + $0x78] sm:$0xff]
        %v1996 = vld [vmem:[#allocation9 + $0x80] sm:$0xff]
        %v1997 = vld [vmem:[#allocation9 + $0x88] sm:$0xff]
        %v1998 = vld [vmem:[#allocation9 + $0x90] sm:$0xff]
        %v1999 = vld [vmem:[#allocation9 + $0x98] sm:$0xff]
        %v2000 = vld [vmem:[#allocation9 + $0xa0] sm:$0xff]
        %v2001 = vld [vmem:[#allocation9 + $0xa8] sm:$0xff]
        %v2002 = vld [vmem:[#allocation9 + $0xb0] sm:$0xff]
        %v2003 = vld [vmem:[#allocation9 + $0xb8] sm:$0xff]
        %v2004 = vld [vmem:[#allocation9 + $0xc0] sm:$0xff]
        %v2005 = vld [vmem:[#allocation9 + $0xc8] sm:$0xff]
        %v2006 = vld [vmem:[#allocation9 + $0xd0] sm:$0xff]
        %v2007 = vld [vmem:[#allocation9 + $0xd8] sm:$0xff]
        %v2008 = vld [vmem:[#allocation9 + $0xe0] sm:$0xff]
        %v2009 = vld [vmem:[#allocation9 + $0xe8] sm:$0xff]
        %v2010 = vld [vmem:[#allocation9 + $0xf0] sm:$0xff]
        %v2011 = vld [vmem:[#allocation9 + $0xf8] sm:$0xff]
        %v2012 = vld [vmem:[#allocation9 + $0x100] sm:$0xff]
        %v2013 = vld [vmem:[#allocation9 + $0x108] sm:$0xff]
        %v2014 = vld [vmem:[#allocation9 + $0x110] sm:$0xff]
        %v2015 = vld [vmem:[#allocation9 + $0x118] sm:$0xff]
        %v2016 = vld [vmem:[#allocation9 + $0x120] sm:$0xff]
        %v2017 = vld [vmem:[#allocation9 + $0x128] sm:$0xff]
        %v2018 = vld [vmem:[#allocation9 + $0x130] sm:$0xff]
        %v2019 = vld [vmem:[#allocation9 + $0x138] sm:$0xff]
        %v2020 = vld [vmem:[#allocation9 + $0x140] sm:$0xff]
        %v2021 = vld [vmem:[#allocation9 + $0x148] sm:$0xff]
        %v2022 = vld [vmem:[#allocation9 + $0x150] sm:$0xff]
        %v2023 = vld [vmem:[#allocation9 + $0x158] sm:$0xff]
        %v2024 = vld [vmem:[#allocation9 + $0x160] sm:$0xff]
        %v2025 = vld [vmem:[#allocation9 + $0x168] sm:$0xff]
        %v2026 = vld [vmem:[#allocation9 + $0x170] sm:$0xff]
        %v2027 = vld [vmem:[#allocation9 + $0x178] sm:$0xff]
        %v2028 = vld [vmem:[#allocation9 + $0x180] sm:$0xff]
        %v2029 = vld [vmem:[#allocation9 + $0x188] sm:$0xff]
        %v2030 = vld [vmem:[#allocation9 + $0x190] sm:$0xff]
        %v2031 = vld [vmem:[#allocation9 + $0x198] sm:$0xff]
        %v2032 = vld [vmem:[#allocation9 + $0x1a0] sm:$0xff]
        %v2033 = vld [vmem:[#allocation9 + $0x1a8] sm:$0xff]
        %v2034 = vld [vmem:[#allocation9 + $0x1b0] sm:$0xff]
        %v2035 = vld [vmem:[#allocation9 + $0x1b8] sm:$0xff]
        %v2036 = vld [vmem:[#allocation9 + $0x1c0] sm:$0xff]
        %v2037 = vld [vmem:[#allocation9 + $0x1c8] sm:$0xff]
        %v2038 = vld [vmem:[#allocation9 + $0x1d0] sm:$0xff]
        %v2039 = vld [vmem:[#allocation9 + $0x1d8] sm:$0xff]
        %v2040 = vld [vmem:[#allocation9 + $0x1e0] sm:$0xff]
        %v2041 = vld [vmem:[#allocation9 + $0x1e8] sm:$0xff]
        %v2042 = vld [vmem:[#allocation9 + $0x1f0] sm:$0xff]
        %v2043 = vld [vmem:[#allocation9 + $0x1f8] sm:$0xff]
        %2044 = vmatpush.msra.mxu0 %v2010
        %2045 = vmatpush.msra.mxu0 %v2008
        %2046 = vmatpush.msra.mxu0 %v2006
        %2047 = vmatpush.msra.mxu0 %v2004
        %2048 = vmatpush.msra.mxu0 %v2002
        %2049 = vmatpush.msra.mxu0 %v2000
        %2050 = vmatpush.msra.mxu0 %v1998
        %2051 = vmatpush.msra.mxu0 %v1996
        %2052 = vmatpush.msra.mxu0 %v1994
        %2053 = vmatpush.msra.mxu0 %v1992
        %2054 = vmatpush.msra.mxu0 %v1990
        %2055 = vmatpush.msra.mxu0 %v1988
        %2056 = vmatpush.msra.mxu0 %v1986
        %2057 = vmatpush.msra.mxu0 %v1984
        %2058 = vmatpush.msra.mxu0 %v1982
        %2059 = vmatpush.msra.mxu0 %v1980
        %2060 = vmatmul.f32.gmra.mxu0 %v1170
        %v2061 = vpop.f32.mrf.mxu0
        %v2062 = vadd.f32 0.0, %v2061
        %2063 = vmatmul.f32.gmra.mxu0 %v1172
        %v2064 = vpop.f32.mrf.mxu0
        %v2065 = vadd.f32 0.0, %v2064
        %2066 = vmatmul.f32.gmra.mxu0 %v1174
        %v2067 = vpop.f32.mrf.mxu0
        %v2068 = vadd.f32 0.0, %v2067
        %2069 = vmatmul.f32.gmra.mxu0 %v1176
        %v2070 = vpop.f32.mrf.mxu0
        %v2071 = vadd.f32 0.0, %v2070
        %2072 = vmatmul.f32.gmra.mxu0 %v1178
        %v2073 = vpop.f32.mrf.mxu0
        %v2074 = vadd.f32 0.0, %v2073
        %2075 = vmatmul.f32.gmra.mxu0 %v1180
        %v2076 = vpop.f32.mrf.mxu0
        %v2077 = vadd.f32 0.0, %v2076
        %2078 = vmatmul.f32.gmra.mxu0 %v1182
        %v2079 = vpop.f32.mrf.mxu0
        %v2080 = vadd.f32 0.0, %v2079
        %2081 = vmatmul.f32.gmra.mxu0 %v1184
        %v2082 = vpop.f32.mrf.mxu0
        %v2083 = vadd.f32 0.0, %v2082
        %2084 = vmatmul.f32.gmra.mxu0 %v1186
        %v2085 = vpop.f32.mrf.mxu0
        %v2086 = vadd.f32 0.0, %v2085
        %2087 = vmatmul.f32.gmra.mxu0 %v1188
        %v2088 = vpop.f32.mrf.mxu0
        %v2089 = vadd.f32 0.0, %v2088
        %2090 = vmatmul.f32.gmra.mxu0 %v1190
        %v2091 = vpop.f32.mrf.mxu0
        %v2092 = vadd.f32 0.0, %v2091
        %2093 = vmatmul.f32.gmra.mxu0 %v1192
        %v2094 = vpop.f32.mrf.mxu0
        %v2095 = vadd.f32 0.0, %v2094
        %2096 = vmatmul.f32.gmra.mxu0 %v1194
        %v2097 = vpop.f32.mrf.mxu0
        %v2098 = vadd.f32 0.0, %v2097
        %2099 = vmatmul.f32.gmra.mxu0 %v1196
        %v2100 = vpop.f32.mrf.mxu0
        %v2101 = vadd.f32 0.0, %v2100
        %2102 = vmatmul.f32.gmra.mxu0 %v1198
        %v2103 = vpop.f32.mrf.mxu0
        %v2104 = vadd.f32 0.0, %v2103
        %2105 = vmatmul.f32.gmra.mxu0 %v1200
        %v2106 = vpop.f32.mrf.mxu0
        %v2107 = vadd.f32 0.0, %v2106
        %2108 = vdwg.mxu0
        %2109 = vmatpush.msra.mxu0 %v2042
        %2110 = vmatpush.msra.mxu0 %v2040
        %2111 = vmatpush.msra.mxu0 %v2038
        %2112 = vmatpush.msra.mxu0 %v2036
        %2113 = vmatpush.msra.mxu0 %v2034
        %2114 = vmatpush.msra.mxu0 %v2032
        %2115 = vmatpush.msra.mxu0 %v2030
        %2116 = vmatpush.msra.mxu0 %v2028
        %2117 = vmatpush.msra.mxu0 %v2026
        %2118 = vmatpush.msra.mxu0 %v2024
        %2119 = vmatpush.msra.mxu0 %v2022
        %2120 = vmatpush.msra.mxu0 %v2020
        %2121 = vmatpush.msra.mxu0 %v2018
        %2122 = vmatpush.msra.mxu0 %v2016
        %2123 = vmatpush.msra.mxu0 %v2014
        %2124 = vmatpush.msra.mxu0 %v2012
        %2125 = vmatmul.f32.gmra.mxu0 %v1171
        %v2126 = vpop.f32.mrf.mxu0
        %v2127 = vadd.f32 %v2062, %v2126
        %2128 = vmatmul.f32.gmra.mxu0 %v1173
        %v2129 = vpop.f32.mrf.mxu0
        %v2130 = vadd.f32 %v2065, %v2129
        %2131 = vmatmul.f32.gmra.mxu0 %v1175
        %v2132 = vpop.f32.mrf.mxu0
        %v2133 = vadd.f32 %v2068, %v2132
        %2134 = vmatmul.f32.gmra.mxu0 %v1177
        %v2135 = vpop.f32.mrf.mxu0
        %v2136 = vadd.f32 %v2071, %v2135
        %2137 = vmatmul.f32.gmra.mxu0 %v1179
        %v2138 = vpop.f32.mrf.mxu0
        %v2139 = vadd.f32 %v2074, %v2138
        %2140 = vmatmul.f32.gmra.mxu0 %v1181
        %v2141 = vpop.f32.mrf.mxu0
        %v2142 = vadd.f32 %v2077, %v2141
        %2143 = vmatmul.f32.gmra.mxu0 %v1183
        %v2144 = vpop.f32.mrf.mxu0
        %v2145 = vadd.f32 %v2080, %v2144
        %2146 = vmatmul.f32.gmra.mxu0 %v1185
        %v2147 = vpop.f32.mrf.mxu0
        %v2148 = vadd.f32 %v2083, %v2147
        %2149 = vmatmul.f32.gmra.mxu0 %v1187
        %v2150 = vpop.f32.mrf.mxu0
        %v2151 = vadd.f32 %v2086, %v2150
        %2152 = vmatmul.f32.gmra.mxu0 %v1189
        %v2153 = vpop.f32.mrf.mxu0
        %v2154 = vadd.f32 %v2089, %v2153
        %2155 = vmatmul.f32.gmra.mxu0 %v1191
        %v2156 = vpop.f32.mrf.mxu0
        %v2157 = vadd.f32 %v2092, %v2156
        %2158 = vmatmul.f32.gmra.mxu0 %v1193
        %v2159 = vpop.f32.mrf.mxu0
        %v2160 = vadd.f32 %v2095, %v2159
        %2161 = vmatmul.f32.gmra.mxu0 %v1195
        %v2162 = vpop.f32.mrf.mxu0
        %v2163 = vadd.f32 %v2098, %v2162
        %2164 = vmatmul.f32.gmra.mxu0 %v1197
        %v2165 = vpop.f32.mrf.mxu0
        %v2166 = vadd.f32 %v2101, %v2165
        %2167 = vmatmul.f32.gmra.mxu0 %v1199
        %v2168 = vpop.f32.mrf.mxu0
        %v2169 = vadd.f32 %v2104, %v2168
        %2170 = vmatmul.f32.gmra.mxu0 %v1201
        %v2171 = vpop.f32.mrf.mxu0
        %v2172 = vadd.f32 %v2107, %v2171
        %2173 = vdwg.mxu0
        %2174 = vmatpush.msra.mxu0 %v2011
        %2175 = vmatpush.msra.mxu0 %v2009
        %2176 = vmatpush.msra.mxu0 %v2007
        %2177 = vmatpush.msra.mxu0 %v2005
        %2178 = vmatpush.msra.mxu0 %v2003
        %2179 = vmatpush.msra.mxu0 %v2001
        %2180 = vmatpush.msra.mxu0 %v1999
        %2181 = vmatpush.msra.mxu0 %v1997
        %2182 = vmatpush.msra.mxu0 %v1995
        %2183 = vmatpush.msra.mxu0 %v1993
        %2184 = vmatpush.msra.mxu0 %v1991
        %2185 = vmatpush.msra.mxu0 %v1989
        %2186 = vmatpush.msra.mxu0 %v1987
        %2187 = vmatpush.msra.mxu0 %v1985
        %2188 = vmatpush.msra.mxu0 %v1983
        %2189 = vmatpush.msra.mxu0 %v1981
        %2190 = vmatmul.f32.gmra.mxu0 %v1170
        %v2191 = vpop.f32.mrf.mxu0
        %v2192 = vadd.f32 0.0, %v2191
        %2193 = vmatmul.f32.gmra.mxu0 %v1172
        %v2194 = vpop.f32.mrf.mxu0
        %v2195 = vadd.f32 0.0, %v2194
        %2196 = vmatmul.f32.gmra.mxu0 %v1174
        %v2197 = vpop.f32.mrf.mxu0
        %v2198 = vadd.f32 0.0, %v2197
        %2199 = vmatmul.f32.gmra.mxu0 %v1176
        %v2200 = vpop.f32.mrf.mxu0
        %v2201 = vadd.f32 0.0, %v2200
        %2202 = vmatmul.f32.gmra.mxu0 %v1178
        %v2203 = vpop.f32.mrf.mxu0
        %v2204 = vadd.f32 0.0, %v2203
        %2205 = vmatmul.f32.gmra.mxu0 %v1180
        %v2206 = vpop.f32.mrf.mxu0
        %v2207 = vadd.f32 0.0, %v2206
        %2208 = vmatmul.f32.gmra.mxu0 %v1182
        %v2209 = vpop.f32.mrf.mxu0
        %v2210 = vadd.f32 0.0, %v2209
        %2211 = vmatmul.f32.gmra.mxu0 %v1184
        %v2212 = vpop.f32.mrf.mxu0
        %v2213 = vadd.f32 0.0, %v2212
        %2214 = vmatmul.f32.gmra.mxu0 %v1186
        %v2215 = vpop.f32.mrf.mxu0
        %v2216 = vadd.f32 0.0, %v2215
        %2217 = vmatmul.f32.gmra.mxu0 %v1188
        %v2218 = vpop.f32.mrf.mxu0
        %v2219 = vadd.f32 0.0, %v2218
        %2220 = vmatmul.f32.gmra.mxu0 %v1190
        %v2221 = vpop.f32.mrf.mxu0
        %v2222 = vadd.f32 0.0, %v2221
        %2223 = vmatmul.f32.gmra.mxu0 %v1192
        %v2224 = vpop.f32.mrf.mxu0
        %v2225 = vadd.f32 0.0, %v2224
        %2226 = vmatmul.f32.gmra.mxu0 %v1194
        %v2227 = vpop.f32.mrf.mxu0
        %v2228 = vadd.f32 0.0, %v2227
        %2229 = vmatmul.f32.gmra.mxu0 %v1196
        %v2230 = vpop.f32.mrf.mxu0
        %v2231 = vadd.f32 0.0, %v2230
        %2232 = vmatmul.f32.gmra.mxu0 %v1198
        %v2233 = vpop.f32.mrf.mxu0
        %v2234 = vadd.f32 0.0, %v2233
        %2235 = vmatmul.f32.gmra.mxu0 %v1200
        %v2236 = vpop.f32.mrf.mxu0
        %v2237 = vadd.f32 0.0, %v2236
        %2238 = vdwg.mxu0
        %2239 = vmatpush.msra.mxu0 %v2043
        %2240 = vmatpush.msra.mxu0 %v2041
        %2241 = vmatpush.msra.mxu0 %v2039
        %2242 = vmatpush.msra.mxu0 %v2037
        %2243 = vmatpush.msra.mxu0 %v2035
        %2244 = vmatpush.msra.mxu0 %v2033
        %2245 = vmatpush.msra.mxu0 %v2031
        %2246 = vmatpush.msra.mxu0 %v2029
        %2247 = vmatpush.msra.mxu0 %v2027
        %2248 = vmatpush.msra.mxu0 %v2025
        %2249 = vmatpush.msra.mxu0 %v2023
        %2250 = vmatpush.msra.mxu0 %v2021
        %2251 = vmatpush.msra.mxu0 %v2019
        %2252 = vmatpush.msra.mxu0 %v2017
        %2253 = vmatpush.msra.mxu0 %v2015
        %2254 = vmatpush.msra.mxu0 %v2013
        %2255 = vmatmul.f32.gmra.mxu0 %v1171
        %v2256 = vpop.f32.mrf.mxu0
        %v2257 = vadd.f32 %v2192, %v2256
        %2258 = vmatmul.f32.gmra.mxu0 %v1173
        %v2259 = vpop.f32.mrf.mxu0
        %v2260 = vadd.f32 %v2195, %v2259
        %2261 = vmatmul.f32.gmra.mxu0 %v1175
        %v2262 = vpop.f32.mrf.mxu0
        %v2263 = vadd.f32 %v2198, %v2262
        %2264 = vmatmul.f32.gmra.mxu0 %v1177
        %v2265 = vpop.f32.mrf.mxu0
        %v2266 = vadd.f32 %v2201, %v2265
        %2267 = vmatmul.f32.gmra.mxu0 %v1179
        %v2268 = vpop.f32.mrf.mxu0
        %v2269 = vadd.f32 %v2204, %v2268
        %2270 = vmatmul.f32.gmra.mxu0 %v1181
        %v2271 = vpop.f32.mrf.mxu0
        %v2272 = vadd.f32 %v2207, %v2271
        %2273 = vmatmul.f32.gmra.mxu0 %v1183
        %v2274 = vpop.f32.mrf.mxu0
        %v2275 = vadd.f32 %v2210, %v2274
        %2276 = vmatmul.f32.gmra.mxu0 %v1185
        %v2277 = vpop.f32.mrf.mxu0
        %v2278 = vadd.f32 %v2213, %v2277
        %2279 = vmatmul.f32.gmra.mxu0 %v1187
        %v2280 = vpop.f32.mrf.mxu0
        %v2281 = vadd.f32 %v2216, %v2280
        %2282 = vmatmul.f32.gmra.mxu0 %v1189
        %v2283 = vpop.f32.mrf.mxu0
        %v2284 = vadd.f32 %v2219, %v2283
        %2285 = vmatmul.f32.gmra.mxu0 %v1191
        %v2286 = vpop.f32.mrf.mxu0
        %v2287 = vadd.f32 %v2222, %v2286
        %2288 = vmatmul.f32.gmra.mxu0 %v1193
        %v2289 = vpop.f32.mrf.mxu0
        %v2290 = vadd.f32 %v2225, %v2289
        %2291 = vmatmul.f32.gmra.mxu0 %v1195
        %v2292 = vpop.f32.mrf.mxu0
        %v2293 = vadd.f32 %v2228, %v2292
        %2294 = vmatmul.f32.gmra.mxu0 %v1197
        %v2295 = vpop.f32.mrf.mxu0
        %v2296 = vadd.f32 %v2231, %v2295
        %2297 = vmatmul.f32.gmra.mxu0 %v1199
        %v2298 = vpop.f32.mrf.mxu0
        %v2299 = vadd.f32 %v2234, %v2298
        %2300 = vmatmul.f32.gmra.mxu0 %v1201
        %v2301 = vpop.f32.mrf.mxu0
        %v2302 = vadd.f32 %v2237, %v2301
        %2303 = vdwg.mxu0
        %v2304 = vmul.f32 %v2127, %v1948
        %v2305 = vmul.f32 %v2257, %v1949
        %v2306 = vmul.f32 %v2130, %v1950
        %v2307 = vmul.f32 %v2260, %v1951
        %v2308 = vmul.f32 %v2133, %v1952
        %v2309 = vmul.f32 %v2263, %v1953
        %v2310 = vmul.f32 %v2136, %v1954
        %v2311 = vmul.f32 %v2266, %v1955
        %v2312 = vmul.f32 %v2139, %v1956
        %v2313 = vmul.f32 %v2269, %v1957
        %v2314 = vmul.f32 %v2142, %v1958
        %v2315 = vmul.f32 %v2272, %v1959
        %v2316 = vmul.f32 %v2145, %v1960
        %v2317 = vmul.f32 %v2275, %v1961
        %v2318 = vmul.f32 %v2148, %v1962
        %v2319 = vmul.f32 %v2278, %v1963
        %v2320 = vmul.f32 %v2151, %v1964
        %v2321 = vmul.f32 %v2281, %v1965
        %v2322 = vmul.f32 %v2154, %v1966
        %v2323 = vmul.f32 %v2284, %v1967
        %v2324 = vmul.f32 %v2157, %v1968
        %v2325 = vmul.f32 %v2287, %v1969
        %v2326 = vmul.f32 %v2160, %v1970
        %v2327 = vmul.f32 %v2290, %v1971
        %v2328 = vmul.f32 %v2163, %v1972
        %v2329 = vmul.f32 %v2293, %v1973
        %v2330 = vmul.f32 %v2166, %v1974
        %v2331 = vmul.f32 %v2296, %v1975
        %v2332 = vmul.f32 %v2169, %v1976
        %v2333 = vmul.f32 %v2299, %v1977
        %v2334 = vmul.f32 %v2172, %v1978
        %v2335 = vmul.f32 %v2302, %v1979
        %v2336 = vld [vmem:[%s7] sm:$0xff]
        %v2337 = vld [vmem:[%s7 + $0x8] sm:$0xff]
        %v2338 = vld [vmem:[%s7 + $0x10] sm:$0xff]
        %v2339 = vld [vmem:[%s7 + $0x18] sm:$0xff]
        %v2340 = vld [vmem:[%s7 + $0x20] sm:$0xff]
        %v2341 = vld [vmem:[%s7 + $0x28] sm:$0xff]
        %v2342 = vld [vmem:[%s7 + $0x30] sm:$0xff]
        %v2343 = vld [vmem:[%s7 + $0x38] sm:$0xff]
        %v2344 = vld [vmem:[%s7 + $0x40] sm:$0xff]
        %v2345 = vld [vmem:[%s7 + $0x48] sm:$0xff]
        %v2346 = vld [vmem:[%s7 + $0x50] sm:$0xff]
        %v2347 = vld [vmem:[%s7 + $0x58] sm:$0xff]
        %v2348 = vld [vmem:[%s7 + $0x60] sm:$0xff]
        %v2349 = vld [vmem:[%s7 + $0x68] sm:$0xff]
        %v2350 = vld [vmem:[%s7 + $0x70] sm:$0xff]
        %v2351 = vld [vmem:[%s7 + $0x78] sm:$0xff]
        %v2352 = vld [vmem:[%s7 + $0x80] sm:$0xff]
        %v2353 = vld [vmem:[%s7 + $0x88] sm:$0xff]
        %v2354 = vld [vmem:[%s7 + $0x90] sm:$0xff]
        %v2355 = vld [vmem:[%s7 + $0x98] sm:$0xff]
        %v2356 = vld [vmem:[%s7 + $0xa0] sm:$0xff]
        %v2357 = vld [vmem:[%s7 + $0xa8] sm:$0xff]
        %v2358 = vld [vmem:[%s7 + $0xb0] sm:$0xff]
        %v2359 = vld [vmem:[%s7 + $0xb8] sm:$0xff]
        %v2360 = vld [vmem:[%s7 + $0xc0] sm:$0xff]
        %v2361 = vld [vmem:[%s7 + $0xc8] sm:$0xff]
        %v2362 = vld [vmem:[%s7 + $0xd0] sm:$0xff]
        %v2363 = vld [vmem:[%s7 + $0xd8] sm:$0xff]
        %v2364 = vld [vmem:[%s7 + $0xe0] sm:$0xff]
        %v2365 = vld [vmem:[%s7 + $0xe8] sm:$0xff]
        %v2366 = vld [vmem:[%s7 + $0xf0] sm:$0xff]
        %v2367 = vld [vmem:[%s7 + $0xf8] sm:$0xff]
        %2368 = vmatpush.msra.mxu0 %v2351
        %2369 = vmatpush.msra.mxu0 %v2350
        %2370 = vmatpush.msra.mxu0 %v2349
        %2371 = vmatpush.msra.mxu0 %v2348
        %2372 = vmatpush.msra.mxu0 %v2347
        %2373 = vmatpush.msra.mxu0 %v2346
        %2374 = vmatpush.msra.mxu0 %v2345
        %2375 = vmatpush.msra.mxu0 %v2344
        %2376 = vmatpush.msra.mxu0 %v2343
        %2377 = vmatpush.msra.mxu0 %v2342
        %2378 = vmatpush.msra.mxu0 %v2341
        %2379 = vmatpush.msra.mxu0 %v2340
        %2380 = vmatpush.msra.mxu0 %v2339
        %2381 = vmatpush.msra.mxu0 %v2338
        %2382 = vmatpush.msra.mxu0 %v2337
        %2383 = vmatpush.msra.mxu0 %v2336
        %2384 = vmatmul.f32.gmra.mxu0 %v2304
        %v2385 = vpop.f32.mrf.mxu0
        %v2386 = vadd.f32 0.0, %v2385
        %2387 = vmatmul.f32.gmra.mxu0 %v2306
        %v2388 = vpop.f32.mrf.mxu0
        %v2389 = vadd.f32 0.0, %v2388
        %2390 = vmatmul.f32.gmra.mxu0 %v2308
        %v2391 = vpop.f32.mrf.mxu0
        %v2392 = vadd.f32 0.0, %v2391
        %2393 = vmatmul.f32.gmra.mxu0 %v2310
        %v2394 = vpop.f32.mrf.mxu0
        %v2395 = vadd.f32 0.0, %v2394
        %2396 = vmatmul.f32.gmra.mxu0 %v2312
        %v2397 = vpop.f32.mrf.mxu0
        %v2398 = vadd.f32 0.0, %v2397
        %2399 = vmatmul.f32.gmra.mxu0 %v2314
        %v2400 = vpop.f32.mrf.mxu0
        %v2401 = vadd.f32 0.0, %v2400
        %2402 = vmatmul.f32.gmra.mxu0 %v2316
        %v2403 = vpop.f32.mrf.mxu0
        %v2404 = vadd.f32 0.0, %v2403
        %2405 = vmatmul.f32.gmra.mxu0 %v2318
        %v2406 = vpop.f32.mrf.mxu0
        %v2407 = vadd.f32 0.0, %v2406
        %2408 = vmatmul.f32.gmra.mxu0 %v2320
        %v2409 = vpop.f32.mrf.mxu0
        %v2410 = vadd.f32 0.0, %v2409
        %2411 = vmatmul.f32.gmra.mxu0 %v2322
        %v2412 = vpop.f32.mrf.mxu0
        %v2413 = vadd.f32 0.0, %v2412
        %2414 = vmatmul.f32.gmra.mxu0 %v2324
        %v2415 = vpop.f32.mrf.mxu0
        %v2416 = vadd.f32 0.0, %v2415
        %2417 = vmatmul.f32.gmra.mxu0 %v2326
        %v2418 = vpop.f32.mrf.mxu0
        %v2419 = vadd.f32 0.0, %v2418
        %2420 = vmatmul.f32.gmra.mxu0 %v2328
        %v2421 = vpop.f32.mrf.mxu0
        %v2422 = vadd.f32 0.0, %v2421
        %2423 = vmatmul.f32.gmra.mxu0 %v2330
        %v2424 = vpop.f32.mrf.mxu0
        %v2425 = vadd.f32 0.0, %v2424
        %2426 = vmatmul.f32.gmra.mxu0 %v2332
        %v2427 = vpop.f32.mrf.mxu0
        %v2428 = vadd.f32 0.0, %v2427
        %2429 = vmatmul.f32.gmra.mxu0 %v2334
        %v2430 = vpop.f32.mrf.mxu0
        %v2431 = vadd.f32 0.0, %v2430
        %2432 = vdwg.mxu0
        %2433 = vmatpush.msra.mxu0 %v2367
        %2434 = vmatpush.msra.mxu0 %v2366
        %2435 = vmatpush.msra.mxu0 %v2365
        %2436 = vmatpush.msra.mxu0 %v2364
        %2437 = vmatpush.msra.mxu0 %v2363
        %2438 = vmatpush.msra.mxu0 %v2362
        %2439 = vmatpush.msra.mxu0 %v2361
        %2440 = vmatpush.msra.mxu0 %v2360
        %2441 = vmatpush.msra.mxu0 %v2359
        %2442 = vmatpush.msra.mxu0 %v2358
        %2443 = vmatpush.msra.mxu0 %v2357
        %2444 = vmatpush.msra.mxu0 %v2356
        %2445 = vmatpush.msra.mxu0 %v2355
        %2446 = vmatpush.msra.mxu0 %v2354
        %2447 = vmatpush.msra.mxu0 %v2353
        %2448 = vmatpush.msra.mxu0 %v2352
        %2449 = vmatmul.f32.gmra.mxu0 %v2305
        %v2450 = vpop.f32.mrf.mxu0
        %v2451 = vadd.f32 %v2386, %v2450
        %2452 = vmatmul.f32.gmra.mxu0 %v2307
        %v2453 = vpop.f32.mrf.mxu0
        %v2454 = vadd.f32 %v2389, %v2453
        %2455 = vmatmul.f32.gmra.mxu0 %v2309
        %v2456 = vpop.f32.mrf.mxu0
        %v2457 = vadd.f32 %v2392, %v2456
        %2458 = vmatmul.f32.gmra.mxu0 %v2311
        %v2459 = vpop.f32.mrf.mxu0
        %v2460 = vadd.f32 %v2395, %v2459
        %2461 = vmatmul.f32.gmra.mxu0 %v2313
        %v2462 = vpop.f32.mrf.mxu0
        %v2463 = vadd.f32 %v2398, %v2462
        %2464 = vmatmul.f32.gmra.mxu0 %v2315
        %v2465 = vpop.f32.mrf.mxu0
        %v2466 = vadd.f32 %v2401, %v2465
        %2467 = vmatmul.f32.gmra.mxu0 %v2317
        %v2468 = vpop.f32.mrf.mxu0
        %v2469 = vadd.f32 %v2404, %v2468
        %2470 = vmatmul.f32.gmra.mxu0 %v2319
        %v2471 = vpop.f32.mrf.mxu0
        %v2472 = vadd.f32 %v2407, %v2471
        %2473 = vmatmul.f32.gmra.mxu0 %v2321
        %v2474 = vpop.f32.mrf.mxu0
        %v2475 = vadd.f32 %v2410, %v2474
        %2476 = vmatmul.f32.gmra.mxu0 %v2323
        %v2477 = vpop.f32.mrf.mxu0
        %v2478 = vadd.f32 %v2413, %v2477
        %2479 = vmatmul.f32.gmra.mxu0 %v2325
        %v2480 = vpop.f32.mrf.mxu0
        %v2481 = vadd.f32 %v2416, %v2480
        %2482 = vmatmul.f32.gmra.mxu0 %v2327
        %v2483 = vpop.f32.mrf.mxu0
        %v2484 = vadd.f32 %v2419, %v2483
        %2485 = vmatmul.f32.gmra.mxu0 %v2329
        %v2486 = vpop.f32.mrf.mxu0
        %v2487 = vadd.f32 %v2422, %v2486
        %2488 = vmatmul.f32.gmra.mxu0 %v2331
        %v2489 = vpop.f32.mrf.mxu0
        %v2490 = vadd.f32 %v2425, %v2489
        %2491 = vmatmul.f32.gmra.mxu0 %v2333
        %v2492 = vpop.f32.mrf.mxu0
        %v2493 = vadd.f32 %v2428, %v2492
        %2494 = vmatmul.f32.gmra.mxu0 %v2335
        %v2495 = vpop.f32.mrf.mxu0
        %v2496 = vadd.f32 %v2431, %v2495
        %2497 = vdwg.mxu0
        %v2498 = vmax.f32 %v2451, 0.0
        %v2499 = vmax.f32 %v2454, 0.0
        %v2500 = vmax.f32 %v2457, 0.0
        %v2501 = vmax.f32 %v2460, 0.0
        %v2502 = vmax.f32 %v2463, 0.0
        %v2503 = vmax.f32 %v2466, 0.0
        %v2504 = vmax.f32 %v2469, 0.0
        %v2505 = vmax.f32 %v2472, 0.0
        %v2506 = vmax.f32 %v2475, 0.0
        %v2507 = vmax.f32 %v2478, 0.0
        %v2508 = vmax.f32 %v2481, 0.0
        %v2509 = vmax.f32 %v2484, 0.0
        %v2510 = vmax.f32 %v2487, 0.0
        %v2511 = vmax.f32 %v2490, 0.0
        %v2512 = vmax.f32 %v2493, 0.0
        %v2513 = vmax.f32 %v2496, 0.0
        %v2514 = vadd.f32 %v2498, 1e-06
        %v2515 = vadd.f32 %v2499, 1e-06
        %v2516 = vadd.f32 %v2500, 1e-06
        %v2517 = vadd.f32 %v2501, 1e-06
        %v2518 = vadd.f32 %v2502, 1e-06
        %v2519 = vadd.f32 %v2503, 1e-06
        %v2520 = vadd.f32 %v2504, 1e-06
        %v2521 = vadd.f32 %v2505, 1e-06
        %v2522 = vadd.f32 %v2506, 1e-06
        %v2523 = vadd.f32 %v2507, 1e-06
        %v2524 = vadd.f32 %v2508, 1e-06
        %v2525 = vadd.f32 %v2509, 1e-06
        %v2526 = vadd.f32 %v2510, 1e-06
        %v2527 = vadd.f32 %v2511, 1e-06
        %v2528 = vadd.f32 %v2512, 1e-06
        %v2529 = vadd.f32 %v2513, 1e-06
        %vm2530 = vcmask 64512
        %2531 = vst.msk [vmem:[%s422] sm:$0xff] %vm2530, %v2514
        %2532 = vst.msk [vmem:[%s422 + $0x8] sm:$0xff] %vm2530, %v2515
        %2533 = vst.msk [vmem:[%s422 + $0x10] sm:$0xff] %vm2530, %v2516
        %2534 = vst.msk [vmem:[%s422 + $0x18] sm:$0xff] %vm2530, %v2517
        %2535 = vst.msk [vmem:[%s422 + $0x20] sm:$0xff] %vm2530, %v2518
        %2536 = vst.msk [vmem:[%s422 + $0x28] sm:$0xff] %vm2530, %v2519
        %2537 = vst.msk [vmem:[%s422 + $0x30] sm:$0xff] %vm2530, %v2520
        %2538 = vst.msk [vmem:[%s422 + $0x38] sm:$0xff] %vm2530, %v2521
        %2539 = vst.msk [vmem:[%s422 + $0x40] sm:$0xff] %vm2530, %v2522
        %2540 = vst.msk [vmem:[%s422 + $0x48] sm:$0xff] %vm2530, %v2523
        %2541 = vst.msk [vmem:[%s422 + $0x50] sm:$0xff] %vm2530, %v2524
        %2542 = vst.msk [vmem:[%s422 + $0x58] sm:$0xff] %vm2530, %v2525
        %2543 = vst.msk [vmem:[%s422 + $0x60] sm:$0xff] %vm2530, %v2526
        %2544 = vst.msk [vmem:[%s422 + $0x68] sm:$0xff] %vm2530, %v2527
        %2545 = vst.msk [vmem:[%s422 + $0x70] sm:$0xff] %vm2530, %v2528
        %2546 = vst.msk [vmem:[%s422 + $0x78] sm:$0xff] %vm2530, %v2529
        %s2547 = smul.u32 16, %s26
        %p2548 = scmp.lt.s32.totalorder %s2547, 63
        %s2549 = scalar_select %p2548, %s2547, 63
        %s2550 = smul.addr %s2549, 8
        %s2551 = scalar_lea.vmem %s8, %s2550
        // Predicated region
        $region73: #{tpu_custom_call.1} parent=51 // pred_check
          %p2552 = pneg %p222
        $region74: #{tpu_custom_call.1} parent=51 // pred_check_branch
          %2554 = sbr.rel (%p2552) target = $region76
        $region75: #{tpu_custom_call.1} parent=51 // pred_region
          %s2555 = smul.u32 16, %s26
        $region76: #{tpu_custom_call.1} parent=51 // pred_fallthru
          _
      $region52: #{tpu_custom_call.1} parent=5 // pred_fallthru
        _
      %p2556 = scmp.le.s32.totalorder 2, %s21
      // Predicated region
      $region77: #{tpu_custom_call.1} parent=5 // pred_check
        %p2557 = pneg %p2556
      $region78: #{tpu_custom_call.1} parent=5 // pred_check_branch
        %2559 = sbr.rel (%p2557) target = $region80
      $region79: #{tpu_custom_call.1} parent=5 // pred_region
        %s2560 = ssub.s32 %s21, 2
        // Predicated region
        $region81: #{tpu_custom_call.1} parent=79 // pred_check
          %p2561 = pneg %p228
        $region82: #{tpu_custom_call.1} parent=79 // pred_check_branch
          %2563 = sbr.rel (%p2561) target = $region84
        $region83: #{tpu_custom_call.1} parent=79 // pred_region
          %s2564 = smul.u32 16, %s27
          %p2565 = scmp.lt.s32.totalorder %s2564, 63
          %s2566 = scalar_select %p2565, %s2564, 63
          %s2567 = smul.addr %s2566, 8
          %s2568 = scalar_lea.vmem %s8, %s2567
        $region84: #{tpu_custom_call.1} parent=79 // pred_fallthru
          _
      $region80: #{tpu_custom_call.1} parent=5 // pred_fallthru
        _
    $region6: #{tpu_custom_call.1} parent=1 // loop_footer
      %s25 = sadd.s32 1, %s21
    $region7: #{tpu_custom_call.1} parent=1 // loop_footer_branch
      %20 = sbr.rel target = $region3
    $region8: #{tpu_custom_call.1} parent=1 // loop_exit
      _
    %2569 = vsyncpa [#allocation3], 1
    %s2570 = scalar_lea.sflag [#allocation3], 1
    %2571 = vsyncpa %s2570, 1
    %2572 = vsyncpa [#allocation5], 1
    %s2573 = scalar_lea.sflag [#allocation5], 1
    %2574 = vsyncpa %s2573, 1
    %2575 = vsyncpa [#allocation8], 1

</llo_original>
